<compile_context>
chip_gen: v6e
topology: v6e:2x2x1
jax: 0.10.0
libtpu: 0.0.40
codegen_flags: <defaults>
</compile_context>

<pallas_src>
import functools

import jax
import jax.numpy as jnp
from jax.experimental import pallas as pl
from jax.experimental.pallas import tpu as pltpu


IN_PAD = 128          # input_size 91 padded to one full lane tile
HALF_PAD = 128        # each 90-wide head padded to a full lane tile
OUT_PAD = 2 * HALF_PAD
TILE_N = 512          # fc2 output-column tile (W2 column-panel width).
                      #   v6e/v7x: 512 fits the 32 MiB default scoped VMEM
                      #   v5e:     use 256 (or raise vmem_limit_bytes)


def _round_up(n, m):
    return ((n + m - 1) // m) * m


def _pad_to(a, axis, target):
    pad = target - a.shape[axis]
    if pad <= 0:
        return a
    widths = [(0, 0)] * a.ndim
    widths[axis] = (0, pad)
    return jnp.pad(a, widths)


# -----------------------------------------------------------------------------
# Stage 1 (gridless): h1 = relu(x @ W1 + b1); Dropout(p=0.5) -> identity.
# W1 is small (~2.5 MiB bf16 at hidden=10240) so it is loaded as one block.
# -----------------------------------------------------------------------------
def fc1_kernel(x_ref, w1_ref, b1_ref, h1_ref):
    h1 = jnp.dot(x_ref[...], w1_ref[...], preferred_element_type=jnp.float32)
    h1 = jnp.maximum(h1 + b1_ref[...], 0.0)
    # TODO(synk): training-mode dropout mask via pltpu.prng_random_bits if needed.
    h1_ref[...] = h1.astype(h1_ref.dtype)


# -----------------------------------------------------------------------------
# Stage 2 (grid over n = fc2 output-column tiles, "parallel"):
#   h2_tile = relu(h1 @ W2[:, tile] + b2[tile])        (one long-K MXU pass)
#   zpart[n] = h2_tile @ W3_fused[tile, :]              (B, 256) partial slab
# Each step is independent -> no carried accumulator -> megacore-splittable.
# -----------------------------------------------------------------------------
def fc2_heads_kernel(h1_ref, w2_ref, b2_ref, w3_ref, zpart_ref):
    h2 = jnp.dot(h1_ref[...], w2_ref[...], preferred_element_type=jnp.float32)
    h2 = jnp.maximum(h2 + b2_ref[...], 0.0).astype(w3_ref.dtype)
    zpart_ref[0] = jnp.dot(h2, w3_ref[...], preferred_element_type=jnp.float32)


# -----------------------------------------------------------------------------
# Stage 3 (gridless epilogue): sum partial slabs, add head bias, softmax(dim=0).
# dim=0 softmax is per-column, so both heads and the zero-padded columns share
# one column-wise softmax over the fused 256-wide block.  Exact reciprocal.
# -----------------------------------------------------------------------------
def head_softmax_kernel(zpart_ref, b3_ref, y_ref):
    z = jnp.sum(zpart_ref[...], axis=0) + b3_ref[...]
    m = jnp.max(z, axis=0, keepdims=True)
    e = jnp.exp(z - m)
    y_ref[...] = e / jnp.sum(e, axis=0, keepdims=True)


# -----------------------------------------------------------------------------
# Parameter packing: pad IN -> 128, hidden -> multiple of the column tile,
# fuse + pad the two heads to (hid, 256), cast weights to bf16 (biases f32).
# -----------------------------------------------------------------------------
def pack_params(params, *, tn=TILE_N):
    w1, b1, w2, b2, w31, b31, w32, b32 = params
    hid_pad = _round_up(w1.shape[1], max(tn, 128))

    w1p = _pad_to(_pad_to(w1, 0, IN_PAD), 1, hid_pad)
    b1p = _pad_to(b1, 1, hid_pad)
    w2p = _pad_to(_pad_to(w2, 0, hid_pad), 1, hid_pad)
    b2p = _pad_to(b2, 1, hid_pad)
    w3p = jnp.concatenate([_pad_to(w31, 1, HALF_PAD), _pad_to(w32, 1, HALF_PAD)],
                          axis=1)
    w3p = _pad_to(w3p, 0, hid_pad)                        # (hid_pad, 256)
    b3p = jnp.concatenate([_pad_to(b31, 1, HALF_PAD), _pad_to(b32, 1, HALF_PAD)],
                          axis=1)                         # (1, 256)

    bf16 = jnp.bfloat16
    # TODO(synk): optional 8-bit W2 stream (int8 on v5e/v6e, fp8 on v7x) to cut
    # the HBM bandwidth floor in half once overhead is no longer dominant.
    return (w1p.astype(bf16), b1p, w2p.astype(bf16), b2p, w3p.astype(bf16), b3p)


def policy_forward(x, packed, half, *, tn=TILE_N):
    w1, b1, w2, b2, w3, b3 = packed
    B = x.shape[0]
    in_pad = w1.shape[0]
    hid_pad = w2.shape[0]
    out_pad = w3.shape[1]

    tn = min(tn, hid_pad)
    assert hid_pad % tn == 0, "hidden padding and column tile must agree"
    n_tiles = hid_pad // tn

    xp = _pad_to(x, 1, in_pad).astype(jnp.bfloat16)

    # --- Stage 1: fc1 + relu (dropout = identity), whole-array blocks. ---
    h1 = pl.pallas_call(
        fc1_kernel,
        out_shape=jax.ShapeDtypeStruct((B, hid_pad), jnp.bfloat16),
    )(xp, w1, b1)

    # --- Stage 2: fc2 column panels + fused-head partial products. ---
    zpart = pl.pallas_call(
        fc2_heads_kernel,
        out_shape=jax.ShapeDtypeStruct((n_tiles, B, out_pad), jnp.float32),
        grid_spec=pltpu.PrefetchScalarGridSpec(
            num_scalar_prefetch=0,
            grid=(n_tiles,),
            in_specs=[
                pl.BlockSpec((B, hid_pad), lambda n: (0, 0)),    # h1 (resident)
                pl.BlockSpec((hid_pad, tn), lambda n: (0, n)),   # W2 column panel
                pl.BlockSpec((1, tn), lambda n: (0, n)),         # b2 tile
                pl.BlockSpec((tn, out_pad), lambda n: (n, 0)),   # fused head panel
            ],
            out_specs=pl.BlockSpec((1, B, out_pad), lambda n: (n, 0, 0)),
        ),
        # Independent per-n slabs -> "parallel": on v7x the W2 stream is split
        # across both TensorCores; harmless on single-TC v5e/v6e.
        compiler_params=pltpu.CompilerParams(
            dimension_semantics=("parallel",),
        ),
    )(h1, w2, b2, w3)

    # --- Stage 3: reduce slabs, bias, dim=0 softmax (lane-dense 256 output). ---
    y = pl.pallas_call(
        head_softmax_kernel,
        out_shape=jax.ShapeDtypeStruct((B, out_pad), jnp.float32),
    )(zpart, b3)

    return y[:, :half], y[:, HALF_PAD:HALF_PAD + half]


# -----------------------------------------------------------------------------
# Deterministic synthetic parameters (nn.Linear layout, stored transposed (in, out)).
# -----------------------------------------------------------------------------
def init_params(key, input_size, hidden_size, output_size):
    half = output_size // 2
    keys = jax.random.split(key, 8)

    def lin(kw, kb, fan_in, fan_out):
        bound = 1.0 / jnp.sqrt(jnp.float32(fan_in))
        w = jax.random.uniform(kw, (fan_in, fan_out), jnp.float32, -bound, bound)
        b = jax.random.uniform(kb, (1, fan_out), jnp.float32, -bound, bound)
        return w, b

    w1, b1 = lin(keys[0], keys[1], input_size, hidden_size)
    w2, b2 = lin(keys[2], keys[3], hidden_size, hidden_size)
    w31, b31 = lin(keys[4], keys[5], hidden_size, half)
    w32, b32 = lin(keys[6], keys[7], hidden_size, half)
    return (w1, b1, w2, b2, w31, b31, w32, b32)


def reference_forward(x, packed, half):
    """Pure-JAX reference mirroring the kernel's compute path (bf16 weights,
    f32 accumulation, eval-mode dropout, dim=0 softmax)."""
    w1, b1, w2, b2, w3, b3 = packed
    xp = _pad_to(x, 1, w1.shape[0]).astype(jnp.bfloat16)
    h1 = jnp.maximum(jnp.dot(xp, w1, preferred_element_type=jnp.float32) + b1,
                     0.0).astype(jnp.bfloat16)
    h2 = jnp.maximum(jnp.dot(h1, w2, preferred_element_type=jnp.float32) + b2,
                     0.0).astype(jnp.bfloat16)
    z = jnp.dot(h2, w3, preferred_element_type=jnp.float32) + b3
    y = jax.nn.softmax(z, axis=0)
    return y[:, :half], y[:, HALF_PAD:HALF_PAD + half]


if __name__ == "__main__":
    # Small shapes consistent with the module: input_size=91, output_size=180
    # (two heads of 90); hidden shrunk from 10000 -> 1024 for the synthetic test
    # (gives n_tiles=2, exercising the streamed panels + slab reduction).
    # The same code handles hidden=10000 (padded to 10240) by streaming W2 panels.
    B, IN, HID, OUT = 8, 91, 1024, 180
    half = OUT // 2

    key = jax.random.PRNGKey(0)
    k_params, k_x = jax.random.split(key)
    params = init_params(k_params, IN, HID, OUT)
    packed = pack_params(params)
    x = jax.random.normal(k_x, (B, IN), jnp.float32)

    fwd = jax.jit(functools.partial(policy_forward, half=half))
    y1, y2 = fwd(x, packed)
    jax.block_until_ready((y1, y2))

    r1, r2 = reference_forward(x, packed, half)
    assert y1.shape == (B, half) and y2.shape == (B, half)
    assert jnp.allclose(y1, r1, atol=2e-3, rtol=2e-3)
    assert jnp.allclose(y2, r2, atol=2e-3, rtol=2e-3)
    # softmax over dim=0: each column sums to 1 (exact reciprocal in the kernel).
    assert jnp.allclose(jnp.sum(y1, axis=0), 1.0, atol=1e-4)
    assert jnp.allclose(jnp.sum(y2, axis=0), 1.0, atol=1e-4)

    print("KERNEL_OK")
</pallas_src>

<mosaic_0001>
module attributes {stable_mosaic.version = 11 : i64} {
  func.func @fc1_kernel(%arg0: memref<8x128xbf16, #tpu.memory_space<vmem>>, %arg1: memref<128x1024xbf16, #tpu.memory_space<vmem>>, %arg2: memref<1x1024xf32, #tpu.memory_space<vmem>>, %arg3: memref<8x1024xbf16, #tpu.memory_space<vmem>>) attributes {dimension_semantics = [], scalar_prefetch = 0 : i64, scratch_operands = 0 : i64, tpu.core_type = #tpu.core_type<tc>} {
    %c0 = arith.constant 0 : index
    %c0_0 = arith.constant 0 : index
    %0 = vector.load %arg0[%c0, %c0_0] : memref<8x128xbf16, #tpu.memory_space<vmem>>, vector<8x128xbf16>
    %c0_1 = arith.constant 0 : index
    %c0_2 = arith.constant 0 : index
    %1 = vector.load %arg1[%c0_1, %c0_2] : memref<128x1024xbf16, #tpu.memory_space<vmem>>, vector<128x1024xbf16>
    %cst = arith.constant dense<0.000000e+00> : vector<8x1024xf32>
    %2 = tpu.matmul %0, %1, %cst {dimension_numbers = #tpu.dot_dimension_numbers<[1], [0], [0], [1], [0, 0, 1, 1], [], []>} : vector<8x128xbf16>, vector<128x1024xbf16>, vector<8x1024xf32> -> vector<8x1024xf32>
    %c0_3 = arith.constant 0 : index
    %c0_4 = arith.constant 0 : index
    %3 = vector.load %arg2[%c0_3, %c0_4] : memref<1x1024xf32, #tpu.memory_space<vmem>>, vector<1x1024xf32>
    %4 = vector.broadcast %3 : vector<1x1024xf32> to vector<8x1024xf32>
    %5 = arith.addf %2, %4 : vector<8x1024xf32>
    %cst_5 = arith.constant 0.000000e+00 : f32
    %6 = vector.broadcast %cst_5 : f32 to vector<8x1024xf32>
    %7 = arith.maximumf %5, %6 : vector<8x1024xf32>
    %8 = arith.truncf %7 : vector<8x1024xf32> to vector<8x1024xbf16>
    %c0_6 = arith.constant 0 : index
    %c0_7 = arith.constant 0 : index
    %9 = vector.load %arg3[%c0_6, %c0_7] : memref<8x1024xbf16, #tpu.memory_space<vmem>>, vector<8x1024xbf16>
    tpu.vector_store %arg3[%c0_6, %c0_7], %8 {strides = array<i32>} : memref<8x1024xbf16, #tpu.memory_space<vmem>>, vector<8x1024xbf16>,
    return
  }
}

module attributes {stable_mosaic.version = 11 : i64} {
  func.func @fc2_heads_kernel(%arg0: i32, %arg1: memref<8x1024xbf16, #tpu.memory_space<vmem>>, %arg2: memref<1024x512xbf16, #tpu.memory_space<vmem>>, %arg3: memref<1x512xf32, #tpu.memory_space<vmem>>, %arg4: memref<512x256xbf16, #tpu.memory_space<vmem>>, %arg5: memref<1x8x256xf32, #tpu.memory_space<vmem>>) attributes {dimension_semantics = [#tpu.dimension_semantics<parallel>], iteration_bounds = array<i64: 2>, scalar_prefetch = 0 : i64, scratch_operands = 0 : i64, tpu.core_type = #tpu.core_type<tc>, window_params = [{pipeline_mode = #tpu.pipeline_mode<synchronous>, transform_indices = @transform_0, window_bounds = array<i64: 8, 1024>}, {transform_indices = @transform_1, window_bounds = array<i64: 1024, 512>}, {transform_indices = @transform_2, window_bounds = array<i64: 1, 512>}, {transform_indices = @transform_3, window_bounds = array<i64: 512, 256>}, {transform_indices = @transform_4, window_bounds = array<i64: 1, 8, 256>}]} {
    %c0 = arith.constant 0 : index
    %c0_0 = arith.constant 0 : index
    %0 = vector.load %arg1[%c0, %c0_0] : memref<8x1024xbf16, #tpu.memory_space<vmem>>, vector<8x1024xbf16>
    %c0_1 = arith.constant 0 : index
    %c0_2 = arith.constant 0 : index
    %1 = vector.load %arg2[%c0_1, %c0_2] : memref<1024x512xbf16, #tpu.memory_space<vmem>>, vector<1024x512xbf16>
    %cst = arith.constant dense<0.000000e+00> : vector<8x512xf32>
    %2 = tpu.matmul %0, %1, %cst {dimension_numbers = #tpu.dot_dimension_numbers<[1], [0], [0], [1], [0, 0, 1, 1], [], []>} : vector<8x1024xbf16>, vector<1024x512xbf16>, vector<8x512xf32> -> vector<8x512xf32>
    %c0_3 = arith.constant 0 : index
    %c0_4 = arith.constant 0 : index
    %3 = vector.load %arg3[%c0_3, %c0_4] : memref<1x512xf32, #tpu.memory_space<vmem>>, vector<1x512xf32>
    %4 = vector.broadcast %3 : vector<1x512xf32> to vector<8x512xf32>
    %5 = arith.addf %2, %4 : vector<8x512xf32>
    %cst_5 = arith.constant 0.000000e+00 : f32
    %6 = vector.broadcast %cst_5 : f32 to vector<8x512xf32>
    %7 = arith.maximumf %5, %6 : vector<8x512xf32>
    %8 = arith.truncf %7 : vector<8x512xf32> to vector<8x512xbf16>
    %c0_6 = arith.constant 0 : index
    %c0_7 = arith.constant 0 : index
    %9 = vector.load %arg4[%c0_6, %c0_7] : memref<512x256xbf16, #tpu.memory_space<vmem>>, vector<512x256xbf16>
    %cst_8 = arith.constant dense<0.000000e+00> : vector<8x256xf32>
    %10 = tpu.matmul %8, %9, %cst_8 {dimension_numbers = #tpu.dot_dimension_numbers<[1], [0], [0], [1], [0, 0, 1, 1], [], []>} : vector<8x512xbf16>, vector<512x256xbf16>, vector<8x256xf32> -> vector<8x256xf32>
    %c0_9 = arith.constant 0 : index
    %c0_10 = arith.constant 0 : index
    %c0_11 = arith.constant 0 : index
    %11 = vector.load %arg5[%c0_9, %c0_10, %c0_11] : memref<1x8x256xf32, #tpu.memory_space<vmem>>, vector<1x8x256xf32>
    %12 = vector.shape_cast %11 : vector<1x8x256xf32> to vector<8x256xf32>
    %13 = vector.shape_cast %10 : vector<8x256xf32> to vector<1x8x256xf32>
    tpu.vector_store %arg5[%c0_9, %c0_10, %c0_11], %13 {strides = array<i32>} : memref<1x8x256xf32, #tpu.memory_space<vmem>>, vector<1x8x256xf32>,
    return
  }
  func.func @transform_0(%arg0: i32) -> (i32, i32) {
    %c0_i32 = arith.constant 0 : i32
    %c0_i32_0 = arith.constant 0 : i32
    %c0_i32_1 = arith.constant 0 : i32
    return %c0_i32, %c0_i32_0 : i32, i32
  }
  func.func @transform_1(%arg0: i32) -> (i32, i32) {
    %c0_i32 = arith.constant 0 : i32
    %c0_i32_0 = arith.constant 0 : i32
    return %c0_i32, %arg0 : i32, i32
  }
  func.func @transform_2(%arg0: i32) -> (i32, i32) {
    %c0_i32 = arith.constant 0 : i32
    %c0_i32_0 = arith.constant 0 : i32
    return %c0_i32, %arg0 : i32, i32
  }
  func.func @transform_3(%arg0: i32) -> (i32, i32) {
    %c0_i32 = arith.constant 0 : i32
    %c0_i32_0 = arith.constant 0 : i32
    return %arg0, %c0_i32 : i32, i32
  }
  func.func @transform_4(%arg0: i32) -> (i32, i32, i32) {
    %c0_i32 = arith.constant 0 : i32
    %c0_i32_0 = arith.constant 0 : i32
    %c0_i32_1 = arith.constant 0 : i32
    return %arg0, %c0_i32, %c0_i32_0 : i32, i32, i32
  }
}

module attributes {stable_mosaic.version = 11 : i64} {
  func.func @head_softmax_kernel(%arg0: memref<2x8x256xf32, #tpu.memory_space<vmem>>, %arg1: memref<1x256xf32, #tpu.memory_space<vmem>>, %arg2: memref<8x256xf32, #tpu.memory_space<vmem>>) attributes {dimension_semantics = [], scalar_prefetch = 0 : i64, scratch_operands = 0 : i64, tpu.core_type = #tpu.core_type<tc>} {
    %c0 = arith.constant 0 : index
    %c0_0 = arith.constant 0 : index
    %c0_1 = arith.constant 0 : index
    %0 = vector.load %arg0[%c0, %c0_0, %c0_1] : memref<2x8x256xf32, #tpu.memory_space<vmem>>, vector<2x8x256xf32>
    %cst = arith.constant dense<0.000000e+00> : vector<8x256xf32>
    %1 = vector.multi_reduction <add>, %0, %cst [0] : vector<2x8x256xf32> to vector<8x256xf32>
    %c0_2 = arith.constant 0 : index
    %c0_3 = arith.constant 0 : index
    %2 = vector.load %arg1[%c0_2, %c0_3] : memref<1x256xf32, #tpu.memory_space<vmem>>, vector<1x256xf32>
    %3 = vector.broadcast %2 : vector<1x256xf32> to vector<8x256xf32>
    %4 = arith.addf %1, %3 : vector<8x256xf32>
    %cst_4 = arith.constant dense<0xFF800000> : vector<256xf32>
    %5 = vector.multi_reduction <maximumf>, %4, %cst_4 [0] : vector<8x256xf32> to vector<256xf32>
    %6 = vector.shape_cast %5 : vector<256xf32> to vector<1x256xf32>
    %7 = vector.broadcast %6 : vector<1x256xf32> to vector<8x256xf32>
    %8 = arith.subf %4, %7 : vector<8x256xf32>
    %9 = math.exp %8 : vector<8x256xf32>
    %cst_5 = arith.constant dense<0.000000e+00> : vector<256xf32>
    %10 = vector.multi_reduction <add>, %9, %cst_5 [0] : vector<8x256xf32> to vector<256xf32>
    %11 = vector.shape_cast %10 : vector<256xf32> to vector<1x256xf32>
    %12 = vector.broadcast %11 : vector<1x256xf32> to vector<8x256xf32>
    %13 = arith.divf %9, %12 : vector<8x256xf32>
    %c0_6 = arith.constant 0 : index
    %c0_7 = arith.constant 0 : index
    %14 = vector.load %arg2[%c0_6, %c0_7] : memref<8x256xf32, #tpu.memory_space<vmem>>, vector<8x256xf32>
    tpu.vector_store %arg2[%c0_6, %c0_7], %13 {strides = array<i32>} : memref<8x256xf32, #tpu.memory_space<vmem>>, vector<8x256xf32>,
    return
  }
}

</mosaic_0001>

<llo_original>
// kernel: policy_forward.5
$region0: #{policy_forward.5}
  #allocation0 [shape = 'u32[]', space=smem, size = 0x4, offset = 0x4, fixed_abs, tag = 'smem constant byte address 0x4 - core index']
  #allocation1 [shape = 'u32[144,128]{1,0:T(1,128)}', space=vmem, size = 0x12000, scoped, tag = 'internal scratch']
  %s0 = inlined_call_operand.vmem [shape: f32[2,8,256], index: 0, kind: input, shape index: {}]
  %s1 = inlined_call_operand.vmem [shape: f32[1,256], index: 1, kind: input, shape index: {}]
  %s2 = inlined_call_operand.vmem [shape: f32[8,256], index: 2, kind: output, shape index: {}]
  %s3 = sld [smem:[#allocation0]]
  $region18: #{policy_forward.5} parent=0
    _
  %s5 = ssub.s32 1, %s3
  %s6 = scalar_select 0, %s5, %s3
  // Predicated region
  $region2: #{policy_forward.5} parent=0 // pred_check
    _
  $region3: #{policy_forward.5} parent=0 // pred_check_branch
    %8 = sbr.rel (0) target = $region5
  $region4: #{policy_forward.5} parent=0 // pred_region
    _
  $region5: #{policy_forward.5} parent=0 // pred_fallthru
    _
  // Predicated region
  $region6: #{policy_forward.5} parent=0 // pred_check
    _
  $region7: #{policy_forward.5} parent=0 // pred_check_branch
    %10 = sbr.rel (0) target = $region9
  $region8: #{policy_forward.5} parent=0 // pred_region
    _
  $region9: #{policy_forward.5} parent=0 // pred_fallthru
    _
  %v11 = vld [vmem:[%s0] sm:$0xff]
  %v12 = vld [vmem:[%s0 + $0x8] sm:$0xff]
  %v13 = vld [vmem:[%s0 + $0x10] sm:$0xff]
  %v14 = vld [vmem:[%s0 + $0x18] sm:$0xff]
  %v15 = vadd.f32 %v11, %v13
  %v16 = vadd.f32 %v12, %v14
  %v17 = vld [vmem:[%s1] sm:$0x3]
  %v19 = vlaneseq
  %v20 = vshrl.u32 %v19, 7
  %v21 = vsub.s32 0, %v20
  %v22 = vrot.slane %v17, %v21
  %v23 = vlaneseq
  %v24 = vshrl.u32 %v23, 7
  %v25 = vsub.s32 1, %v24
  %v26 = vrot.slane %v17, %v25
  %v29 = vadd.f32 %v15, %v22
  %v30 = vadd.f32 %v16, %v26
  %v31 = vrot.slane %v29, 4
  %v32 = vmax.f32 %v29, %v31
  %v33 = vrot.slane %v32, 2
  %v34 = vmax.f32 %v32, %v33
  %v35 = vrot.slane %v34, 1
  %v36 = vmax.f32 %v34, %v35
  %v37 = vrot.slane %v30, 4
  %v38 = vmax.f32 %v30, %v37
  %v39 = vrot.slane %v38, 2
  %v40 = vmax.f32 %v38, %v39
  %v41 = vrot.slane %v40, 1
  %v42 = vmax.f32 %v40, %v41
  %v43 = vsub.f32 %v29, %v36
  %v44 = vsub.f32 %v30, %v42
  %v45 = vmul.f32 %v43, 1.442695
  %v46 = vpow.pop %v45
  %v47 = vmul.f32 %v44, 1.442695
  %v48 = vpow.pop %v47
  %v49 = vrot.slane %v46, 4
  %v50 = vadd.f32 %v46, %v49
  %v51 = vrot.slane %v50, 2
  %v52 = vadd.f32 %v50, %v51
  %v53 = vrot.slane %v52, 1
  %v54 = vadd.f32 %v52, %v53
  %v55 = vrot.slane %v48, 4
  %v56 = vadd.f32 %v48, %v55
  %v57 = vrot.slane %v56, 2
  %v58 = vadd.f32 %v56, %v57
  %v59 = vrot.slane %v58, 1
  %v60 = vadd.f32 %v58, %v59
  %v61 = vrcp.pop %v54
  %v62 = vmul.f32 %v46, %v61
  %v63 = vrcp.pop %v60
  %v64 = vmul.f32 %v48, %v63
  %65 = vst [vmem:[%s2] sm:$0xff] %v62
  %66 = vst [vmem:[%s2 + $0x8] sm:$0xff] %v64
  // Predicated region
  $region10: #{policy_forward.5} parent=0 // pred_check
    _
  $region11: #{policy_forward.5} parent=0 // pred_check_branch
    %68 = sbr.rel (0) target = $region13
  $region12: #{policy_forward.5} parent=0 // pred_region
    _
  $region13: #{policy_forward.5} parent=0 // pred_fallthru
    _
  // Predicated region
  $region14: #{policy_forward.5} parent=0 // pred_check
    _
  $region15: #{policy_forward.5} parent=0 // pred_check_branch
    %70 = sbr.rel (0) target = $region17
  $region16: #{policy_forward.5} parent=0 // pred_region
    _
  $region17: #{policy_forward.5} parent=0 // pred_fallthru
    _

// kernel: policy_forward.3
$region0: #{policy_forward.3}
  #allocation0 [shape = 'u32[]', space=smem, size = 0x4, offset = 0x4, fixed_abs, tag = 'smem constant byte address 0x4 - core index']
  #allocation1 [shape = 'u32[144,128]{1,0:T(1,128)}', space=vmem, size = 0x12000, scoped, tag = 'internal scratch']
  %s0 = inlined_call_operand.vmem [shape: bf16[8,128], index: 0, kind: input, shape index: {}]
  %s1 = inlined_call_operand.hbm [shape: bf16[128,1024], index: 1, kind: input, shape index: {}]
  %s2 = inlined_call_operand.hbm [shape: f32[1,1024], index: 2, kind: input, shape index: {}]
  %s3 = inlined_call_operand.vmem [shape: bf16[8,1024], index: 3, kind: output, shape index: {}]
  %s4 = sld [smem:[#allocation0]]
  $region30: #{policy_forward.3} parent=0
    _
  %s6 = ssub.s32 1, %s4
  %s7 = scalar_select 0, %s6, %s4
  $region1: #{policy_forward.3} parent=0
    #allocation2 [shape = 'u8[262144]{0}', space=vmem, size = 0x40000, scoped, tag = 'input window, operand 1, single buffered']
    #allocation3 [shape = 's32[1]{0}', space=sflag, size = 0x4, scoped, tag = 'scoped memory for policy_forward.3']
    #allocation4 [shape = 'u8[4096]{0}', space=vmem, size = 0x1000, scoped, tag = 'input window, operand 2, single buffered']
    #allocation5 [shape = 's32[1]{0}', space=sflag, size = 0x4, scoped, tag = 'scoped memory for policy_forward.3']
    %8 = vsyncpa [#allocation3], 0
    %9 = vsyncpa [#allocation5], 0
    // Predicated region
    $region2: #{policy_forward.3} parent=1 // pred_check
      _
    $region3: #{policy_forward.3} parent=1 // pred_check_branch
      %11 = sbr.rel (0) target = $region5
    $region4: #{policy_forward.3} parent=1 // pred_region
      _
    $region5: #{policy_forward.3} parent=1 // pred_fallthru
      _
    // Predicated region
    $region6: #{policy_forward.3} parent=1 // pred_check
      _
    $region7: #{policy_forward.3} parent=1 // pred_check_branch
      %13 = sbr.rel (0) target = $region9
    $region8: #{policy_forward.3} parent=1 // pred_region
      %s15 = ssub.s32 8192, 8192
      %16 = vsyncadd [#allocation3], %s15
      %s17 = sshll.u32 [#allocation2], 4
      %s18 = int_to_ptr.vmem [resolvable:$true] %s17
      %23 = dma.hbm_to_vmem [thread:$0]  %s1, 8192, %s18, [#allocation3], 512, 512, 32
    $region9: #{policy_forward.3} parent=1 // pred_fallthru
      _
    // Predicated region
    $region10: #{policy_forward.3} parent=1 // pred_check
      _
    $region11: #{policy_forward.3} parent=1 // pred_check_branch
      %25 = sbr.rel (0) target = $region13
    $region12: #{policy_forward.3} parent=1 // pred_region
      %s27 = ssub.s32 128, 128
      %28 = vsyncadd [#allocation5], %s27
      %s30 = sshll.u32 [#allocation4], 4
      %s31 = int_to_ptr.vmem [resolvable:$true] %s30
      %33 = dma.hbm_to_vmem [thread:$0]  %s2, 128, %s31, [#allocation5]
    $region13: #{policy_forward.3} parent=1 // pred_fallthru
      _
    // Predicated region
    $region14: #{policy_forward.3} parent=1 // pred_check
      _
    $region15: #{policy_forward.3} parent=1 // pred_check_branch
      %35 = sbr.rel (0) target = $region17
    $region16: #{policy_forward.3} parent=1 // pred_region
      %36 = dma.done [#allocation3], 8192
    $region17: #{policy_forward.3} parent=1 // pred_fallthru
      _
    // Predicated region
    $region18: #{policy_forward.3} parent=1 // pred_check
      _
    $region19: #{policy_forward.3} parent=1 // pred_check_branch
      %38 = sbr.rel (0) target = $region21
    $region20: #{policy_forward.3} parent=1 // pred_region
      %39 = dma.done [#allocation5], 128
    $region21: #{policy_forward.3} parent=1 // pred_fallthru
      _
    %v41 = vld [vmem:[%s0] sm:$0xf]
    %v42 = vld [vmem:[#allocation2] sm:$0xff]
    %v43 = vld [vmem:[#allocation2 + $0x8] sm:$0xff]
    %v44 = vld [vmem:[#allocation2 + $0x10] sm:$0xff]
    %v45 = vld [vmem:[#allocation2 + $0x18] sm:$0xff]
    %v46 = vld [vmem:[#allocation2 + $0x20] sm:$0xff]
    %v47 = vld [vmem:[#allocation2 + $0x28] sm:$0xff]
    %v48 = vld [vmem:[#allocation2 + $0x30] sm:$0xff]
    %v49 = vld [vmem:[#allocation2 + $0x38] sm:$0xff]
    %v50 = vld [vmem:[#allocation2 + $0x40] sm:$0xff]
    %v51 = vld [vmem:[#allocation2 + $0x48] sm:$0xff]
    %v52 = vld [vmem:[#allocation2 + $0x50] sm:$0xff]
    %v53 = vld [vmem:[#allocation2 + $0x58] sm:$0xff]
    %v54 = vld [vmem:[#allocation2 + $0x60] sm:$0xff]
    %v55 = vld [vmem:[#allocation2 + $0x68] sm:$0xff]
    %v56 = vld [vmem:[#allocation2 + $0x70] sm:$0xff]
    %v57 = vld [vmem:[#allocation2 + $0x78] sm:$0xff]
    %v58 = vld [vmem:[#allocation2 + $0x80] sm:$0xff]
    %v59 = vld [vmem:[#allocation2 + $0x88] sm:$0xff]
    %v60 = vld [vmem:[#allocation2 + $0x90] sm:$0xff]
    %v61 = vld [vmem:[#allocation2 + $0x98] sm:$0xff]
    %v62 = vld [vmem:[#allocation2 + $0xa0] sm:$0xff]
    %v63 = vld [vmem:[#allocation2 + $0xa8] sm:$0xff]
    %v64 = vld [vmem:[#allocation2 + $0xb0] sm:$0xff]
    %v65 = vld [vmem:[#allocation2 + $0xb8] sm:$0xff]
    %v66 = vld [vmem:[#allocation2 + $0xc0] sm:$0xff]
    %v67 = vld [vmem:[#allocation2 + $0xc8] sm:$0xff]
    %v68 = vld [vmem:[#allocation2 + $0xd0] sm:$0xff]
    %v69 = vld [vmem:[#allocation2 + $0xd8] sm:$0xff]
    %v70 = vld [vmem:[#allocation2 + $0xe0] sm:$0xff]
    %v71 = vld [vmem:[#allocation2 + $0xe8] sm:$0xff]
    %v72 = vld [vmem:[#allocation2 + $0xf0] sm:$0xff]
    %v73 = vld [vmem:[#allocation2 + $0xf8] sm:$0xff]
    %v74 = vld [vmem:[#allocation2 + $0x100] sm:$0xff]
    %v75 = vld [vmem:[#allocation2 + $0x108] sm:$0xff]
    %v76 = vld [vmem:[#allocation2 + $0x110] sm:$0xff]
    %v77 = vld [vmem:[#allocation2 + $0x118] sm:$0xff]
    %v78 = vld [vmem:[#allocation2 + $0x120] sm:$0xff]
    %v79 = vld [vmem:[#allocation2 + $0x128] sm:$0xff]
    %v80 = vld [vmem:[#allocation2 + $0x130] sm:$0xff]
    %v81 = vld [vmem:[#allocation2 + $0x138] sm:$0xff]
    %v82 = vld [vmem:[#allocation2 + $0x140] sm:$0xff]
    %v83 = vld [vmem:[#allocation2 + $0x148] sm:$0xff]
    %v84 = vld [vmem:[#allocation2 + $0x150] sm:$0xff]
    %v85 = vld [vmem:[#allocation2 + $0x158] sm:$0xff]
    %v86 = vld [vmem:[#allocation2 + $0x160] sm:$0xff]
    %v87 = vld [vmem:[#allocation2 + $0x168] sm:$0xff]
    %v88 = vld [vmem:[#allocation2 + $0x170] sm:$0xff]
    %v89 = vld [vmem:[#allocation2 + $0x178] sm:$0xff]
    %v90 = vld [vmem:[#allocation2 + $0x180] sm:$0xff]
    %v91 = vld [vmem:[#allocation2 + $0x188] sm:$0xff]
    %v92 = vld [vmem:[#allocation2 + $0x190] sm:$0xff]
    %v93 = vld [vmem:[#allocation2 + $0x198] sm:$0xff]
    %v94 = vld [vmem:[#allocation2 + $0x1a0] sm:$0xff]
    %v95 = vld [vmem:[#allocation2 + $0x1a8] sm:$0xff]
    %v96 = vld [vmem:[#allocation2 + $0x1b0] sm:$0xff]
    %v97 = vld [vmem:[#allocation2 + $0x1b8] sm:$0xff]
    %v98 = vld [vmem:[#allocation2 + $0x1c0] sm:$0xff]
    %v99 = vld [vmem:[#allocation2 + $0x1c8] sm:$0xff]
    %v100 = vld [vmem:[#allocation2 + $0x1d0] sm:$0xff]
    %v101 = vld [vmem:[#allocation2 + $0x1d8] sm:$0xff]
    %v102 = vld [vmem:[#allocation2 + $0x1e0] sm:$0xff]
    %v103 = vld [vmem:[#allocation2 + $0x1e8] sm:$0xff]
    %v104 = vld [vmem:[#allocation2 + $0x1f0] sm:$0xff]
    %v105 = vld [vmem:[#allocation2 + $0x1f8] sm:$0xff]
    %v106 = vld [vmem:[#allocation4] sm:$0xff]
    %v108 = vlaneseq
    %v109 = vshrl.u32 %v108, 7
    %v110 = vsub.s32 0, %v109
    %v111 = vrot.slane %v106, %v110
    %v112 = vlaneseq
    %v113 = vshrl.u32 %v112, 7
    %v114 = vsub.s32 1, %v113
    %v115 = vrot.slane %v106, %v114
    %v116 = vlaneseq
    %v117 = vshrl.u32 %v116, 7
    %v118 = vsub.s32 2, %v117
    %v119 = vrot.slane %v106, %v118
    %v120 = vlaneseq
    %v121 = vshrl.u32 %v120, 7
    %v122 = vsub.s32 3, %v121
    %v123 = vrot.slane %v106, %v122
    %v124 = vlaneseq
    %v125 = vshrl.u32 %v124, 7
    %v126 = vsub.s32 4, %v125
    %v127 = vrot.slane %v106, %v126
    %v128 = vlaneseq
    %v129 = vshrl.u32 %v128, 7
    %v130 = vsub.s32 5, %v129
    %v131 = vrot.slane %v106, %v130
    %v132 = vlaneseq
    %v133 = vshrl.u32 %v132, 7
    %v134 = vsub.s32 6, %v133
    %v135 = vrot.slane %v106, %v134
    %v136 = vlaneseq
    %v137 = vshrl.u32 %v136, 7
    %v138 = vsub.s32 7, %v137
    %v139 = vrot.slane %v106, %v138
    %v212 = vunpack.c.l.b16 %v42
    %v213 = vunpack.c.h.b16 %v42
    %v214 = vunpack.c.l.b16 %v43
    %v215 = vunpack.c.h.b16 %v43
    %v216 = vunpack.c.l.b16 %v44
    %v217 = vunpack.c.h.b16 %v44
    %v218 = vunpack.c.l.b16 %v45
    %v219 = vunpack.c.h.b16 %v45
    %v220 = vunpack.c.l.b16 %v46
    %v221 = vunpack.c.h.b16 %v46
    %v222 = vunpack.c.l.b16 %v47
    %v223 = vunpack.c.h.b16 %v47
    %v224 = vunpack.c.l.b16 %v48
    %v225 = vunpack.c.h.b16 %v48
    %v226 = vunpack.c.l.b16 %v49
    %v227 = vunpack.c.h.b16 %v49
    %v228 = vunpack.c.l.b16 %v50
    %v229 = vunpack.c.h.b16 %v50
    %v230 = vunpack.c.l.b16 %v51
    %v231 = vunpack.c.h.b16 %v51
    %v232 = vunpack.c.l.b16 %v52
    %v233 = vunpack.c.h.b16 %v52
    %v234 = vunpack.c.l.b16 %v53
    %v235 = vunpack.c.h.b16 %v53
    %v236 = vunpack.c.l.b16 %v54
    %v237 = vunpack.c.h.b16 %v54
    %v238 = vunpack.c.l.b16 %v55
    %v239 = vunpack.c.h.b16 %v55
    %v240 = vunpack.c.l.b16 %v56
    %v241 = vunpack.c.h.b16 %v56
    %v242 = vunpack.c.l.b16 %v57
    %v243 = vunpack.c.h.b16 %v57
    %v244 = vunpack.c.l.b16 %v58
    %v245 = vunpack.c.h.b16 %v58
    %v246 = vunpack.c.l.b16 %v59
    %v247 = vunpack.c.h.b16 %v59
    %v248 = vunpack.c.l.b16 %v60
    %v249 = vunpack.c.h.b16 %v60
    %v250 = vunpack.c.l.b16 %v61
    %v251 = vunpack.c.h.b16 %v61
    %v252 = vunpack.c.l.b16 %v62
    %v253 = vunpack.c.h.b16 %v62
    %v254 = vunpack.c.l.b16 %v63
    %v255 = vunpack.c.h.b16 %v63
    %v256 = vunpack.c.l.b16 %v64
    %v257 = vunpack.c.h.b16 %v64
    %v258 = vunpack.c.l.b16 %v65
    %v259 = vunpack.c.h.b16 %v65
    %v260 = vunpack.c.l.b16 %v66
    %v261 = vunpack.c.h.b16 %v66
    %v262 = vunpack.c.l.b16 %v67
    %v263 = vunpack.c.h.b16 %v67
    %v264 = vunpack.c.l.b16 %v68
    %v265 = vunpack.c.h.b16 %v68
    %v266 = vunpack.c.l.b16 %v69
    %v267 = vunpack.c.h.b16 %v69
    %v268 = vunpack.c.l.b16 %v70
    %v269 = vunpack.c.h.b16 %v70
    %v270 = vunpack.c.l.b16 %v71
    %v271 = vunpack.c.h.b16 %v71
    %v272 = vunpack.c.l.b16 %v72
    %v273 = vunpack.c.h.b16 %v72
    %v274 = vunpack.c.l.b16 %v73
    %v275 = vunpack.c.h.b16 %v73
    %v276 = vunpack.c.l.b16 %v74
    %v277 = vunpack.c.h.b16 %v74
    %v278 = vunpack.c.l.b16 %v75
    %v279 = vunpack.c.h.b16 %v75
    %v280 = vunpack.c.l.b16 %v76
    %v281 = vunpack.c.h.b16 %v76
    %v282 = vunpack.c.l.b16 %v77
    %v283 = vunpack.c.h.b16 %v77
    %v284 = vunpack.c.l.b16 %v78
    %v285 = vunpack.c.h.b16 %v78
    %v286 = vunpack.c.l.b16 %v79
    %v287 = vunpack.c.h.b16 %v79
    %v288 = vunpack.c.l.b16 %v80
    %v289 = vunpack.c.h.b16 %v80
    %v290 = vunpack.c.l.b16 %v81
    %v291 = vunpack.c.h.b16 %v81
    %v292 = vunpack.c.l.b16 %v82
    %v293 = vunpack.c.h.b16 %v82
    %v294 = vunpack.c.l.b16 %v83
    %v295 = vunpack.c.h.b16 %v83
    %v296 = vunpack.c.l.b16 %v84
    %v297 = vunpack.c.h.b16 %v84
    %v298 = vunpack.c.l.b16 %v85
    %v299 = vunpack.c.h.b16 %v85
    %v300 = vunpack.c.l.b16 %v86
    %v301 = vunpack.c.h.b16 %v86
    %v302 = vunpack.c.l.b16 %v87
    %v303 = vunpack.c.h.b16 %v87
    %v304 = vunpack.c.l.b16 %v88
    %v305 = vunpack.c.h.b16 %v88
    %v306 = vunpack.c.l.b16 %v89
    %v307 = vunpack.c.h.b16 %v89
    %v308 = vunpack.c.l.b16 %v90
    %v309 = vunpack.c.h.b16 %v90
    %v310 = vunpack.c.l.b16 %v91
    %v311 = vunpack.c.h.b16 %v91
    %v312 = vunpack.c.l.b16 %v92
    %v313 = vunpack.c.h.b16 %v92
    %v314 = vunpack.c.l.b16 %v93
    %v315 = vunpack.c.h.b16 %v93
    %v316 = vunpack.c.l.b16 %v94
    %v317 = vunpack.c.h.b16 %v94
    %v318 = vunpack.c.l.b16 %v95
    %v319 = vunpack.c.h.b16 %v95
    %v320 = vunpack.c.l.b16 %v96
    %v321 = vunpack.c.h.b16 %v96
    %v322 = vunpack.c.l.b16 %v97
    %v323 = vunpack.c.h.b16 %v97
    %v324 = vunpack.c.l.b16 %v98
    %v325 = vunpack.c.h.b16 %v98
    %v326 = vunpack.c.l.b16 %v99
    %v327 = vunpack.c.h.b16 %v99
    %v328 = vunpack.c.l.b16 %v100
    %v329 = vunpack.c.h.b16 %v100
    %v330 = vunpack.c.l.b16 %v101
    %v331 = vunpack.c.h.b16 %v101
    %v332 = vunpack.c.l.b16 %v102
    %v333 = vunpack.c.h.b16 %v102
    %v334 = vunpack.c.l.b16 %v103
    %v335 = vunpack.c.h.b16 %v103
    %v336 = vunpack.c.l.b16 %v104
    %v337 = vunpack.c.h.b16 %v104
    %v338 = vunpack.c.l.b16 %v105
    %v339 = vunpack.c.h.b16 %v105
    %v340 = vpack.c.b16 %v220, %v212
    %v341 = vpack.c.b16 %v221, %v213
    %v342 = vpack.c.b16 %v222, %v214
    %v343 = vpack.c.b16 %v223, %v215
    %v344 = vpack.c.b16 %v224, %v216
    %v345 = vpack.c.b16 %v225, %v217
    %v346 = vpack.c.b16 %v226, %v218
    %v347 = vpack.c.b16 %v227, %v219
    %v348 = vpack.c.b16 %v236, %v228
    %v349 = vpack.c.b16 %v237, %v229
    %v350 = vpack.c.b16 %v238, %v230
    %v351 = vpack.c.b16 %v239, %v231
    %v352 = vpack.c.b16 %v240, %v232
    %v353 = vpack.c.b16 %v241, %v233
    %v354 = vpack.c.b16 %v242, %v234
    %v355 = vpack.c.b16 %v243, %v235
    %v356 = vpack.c.b16 %v252, %v244
    %v357 = vpack.c.b16 %v253, %v245
    %v358 = vpack.c.b16 %v254, %v246
    %v359 = vpack.c.b16 %v255, %v247
    %v360 = vpack.c.b16 %v256, %v248
    %v361 = vpack.c.b16 %v257, %v249
    %v362 = vpack.c.b16 %v258, %v250
    %v363 = vpack.c.b16 %v259, %v251
    %v364 = vpack.c.b16 %v268, %v260
    %v365 = vpack.c.b16 %v269, %v261
    %v366 = vpack.c.b16 %v270, %v262
    %v367 = vpack.c.b16 %v271, %v263
    %v368 = vpack.c.b16 %v272, %v264
    %v369 = vpack.c.b16 %v273, %v265
    %v370 = vpack.c.b16 %v274, %v266
    %v371 = vpack.c.b16 %v275, %v267
    %v372 = vpack.c.b16 %v284, %v276
    %v373 = vpack.c.b16 %v285, %v277
    %v374 = vpack.c.b16 %v286, %v278
    %v375 = vpack.c.b16 %v287, %v279
    %v376 = vpack.c.b16 %v288, %v280
    %v377 = vpack.c.b16 %v289, %v281
    %v378 = vpack.c.b16 %v290, %v282
    %v379 = vpack.c.b16 %v291, %v283
    %v380 = vpack.c.b16 %v300, %v292
    %v381 = vpack.c.b16 %v301, %v293
    %v382 = vpack.c.b16 %v302, %v294
    %v383 = vpack.c.b16 %v303, %v295
    %v384 = vpack.c.b16 %v304, %v296
    %v385 = vpack.c.b16 %v305, %v297
    %v386 = vpack.c.b16 %v306, %v298
    %v387 = vpack.c.b16 %v307, %v299
    %v388 = vpack.c.b16 %v316, %v308
    %v389 = vpack.c.b16 %v317, %v309
    %v390 = vpack.c.b16 %v318, %v310
    %v391 = vpack.c.b16 %v319, %v311
    %v392 = vpack.c.b16 %v320, %v312
    %v393 = vpack.c.b16 %v321, %v313
    %v394 = vpack.c.b16 %v322, %v314
    %v395 = vpack.c.b16 %v323, %v315
    %v396 = vpack.c.b16 %v332, %v324
    %v397 = vpack.c.b16 %v333, %v325
    %v398 = vpack.c.b16 %v334, %v326
    %v399 = vpack.c.b16 %v335, %v327
    %v400 = vpack.c.b16 %v336, %v328
    %v401 = vpack.c.b16 %v337, %v329
    %v402 = vpack.c.b16 %v338, %v330
    %v403 = vpack.c.b16 %v339, %v331
    %468 = vmatprep.subr.bf16.mxu0 %v397
    %469 = vmatpush1.bf16.msra.mxu0 %v396
    %470 = vmatprep.subr.bf16.mxu0 %v389
    %471 = vmatpush1.bf16.msra.mxu0 %v388
    %472 = vmatprep.subr.bf16.mxu0 %v381
    %473 = vmatpush1.bf16.msra.mxu0 %v380
    %474 = vmatprep.subr.bf16.mxu0 %v373
    %475 = vmatpush1.bf16.msra.mxu0 %v372
    %476 = vmatprep.subr.bf16.mxu0 %v365
    %477 = vmatpush1.bf16.msra.mxu0 %v364
    %478 = vmatprep.subr.bf16.mxu0 %v357
    %479 = vmatpush1.bf16.msra.mxu0 %v356
    %480 = vmatprep.subr.bf16.mxu0 %v349
    %481 = vmatpush1.bf16.msra.mxu0 %v348
    %482 = vmatprep.subr.bf16.mxu0 %v341
    %483 = vmatpush1.bf16.msra.mxu0 %v340
    %484 = vmatprep.subr.bf16.mxu0 0
    %485 = vmatpush2.bf16.msra.mxu0 0
    %486 = vmatprep.subr.bf16.mxu0 0
    %487 = vmatpush2.bf16.msra.mxu0 0
    %488 = vmatprep.subr.bf16.mxu0 0
    %489 = vmatpush2.bf16.msra.mxu0 0
    %490 = vmatprep.subr.bf16.mxu0 0
    %491 = vmatpush2.bf16.msra.mxu0 0
    %492 = vmatprep.subr.bf16.mxu0 0
    %493 = vmatpush2.bf16.msra.mxu0 0
    %494 = vmatprep.subr.bf16.mxu0 0
    %495 = vmatpush2.bf16.msra.mxu0 0
    %496 = vmatprep.subr.bf16.mxu0 0
    %497 = vmatpush2.bf16.msra.mxu0 0
    %498 = vmatprep.subr.bf16.mxu0 0
    %499 = vmatpush2.bf16.msra.mxu0 0
    %500 = vmatprep.mubr.bf16.mxu0 0
    %501 = vmatmul.mubr.bf16.gmra.mxu0 %v41
    %v502 = vpop.f32.mrf.mxu0
    %v503 = vadd.f32 %v111, %v502
    %v504 = vpop.f32.mrf.mxu0
    %v505 = vadd.f32 %v115, %v504
    %v506 = vpop.f32.mrf.mxu0
    %v507 = vpop.f32.mrf.mxu0
    %508 = vdwg.mxu0
    %509 = vmatprep.subr.bf16.mxu0 %v399
    %510 = vmatpush1.bf16.msra.mxu0 %v398
    %511 = vmatprep.subr.bf16.mxu0 %v391
    %512 = vmatpush1.bf16.msra.mxu0 %v390
    %513 = vmatprep.subr.bf16.mxu0 %v383
    %514 = vmatpush1.bf16.msra.mxu0 %v382
    %515 = vmatprep.subr.bf16.mxu0 %v375
    %516 = vmatpush1.bf16.msra.mxu0 %v374
    %517 = vmatprep.subr.bf16.mxu0 %v367
    %518 = vmatpush1.bf16.msra.mxu0 %v366
    %519 = vmatprep.subr.bf16.mxu0 %v359
    %520 = vmatpush1.bf16.msra.mxu0 %v358
    %521 = vmatprep.subr.bf16.mxu0 %v351
    %522 = vmatpush1.bf16.msra.mxu0 %v350
    %523 = vmatprep.subr.bf16.mxu0 %v343
    %524 = vmatpush1.bf16.msra.mxu0 %v342
    %525 = vmatprep.subr.bf16.mxu0 0
    %526 = vmatpush2.bf16.msra.mxu0 0
    %527 = vmatprep.subr.bf16.mxu0 0
    %528 = vmatpush2.bf16.msra.mxu0 0
    %529 = vmatprep.subr.bf16.mxu0 0
    %530 = vmatpush2.bf16.msra.mxu0 0
    %531 = vmatprep.subr.bf16.mxu0 0
    %532 = vmatpush2.bf16.msra.mxu0 0
    %533 = vmatprep.subr.bf16.mxu0 0
    %534 = vmatpush2.bf16.msra.mxu0 0
    %535 = vmatprep.subr.bf16.mxu0 0
    %536 = vmatpush2.bf16.msra.mxu0 0
    %537 = vmatprep.subr.bf16.mxu0 0
    %538 = vmatpush2.bf16.msra.mxu0 0
    %539 = vmatprep.subr.bf16.mxu0 0
    %540 = vmatpush2.bf16.msra.mxu0 0
    %541 = vmatprep.mubr.bf16.mxu0 0
    %542 = vmatmul.mubr.bf16.gmra.mxu0 %v41
    %v543 = vpop.f32.mrf.mxu0
    %v544 = vadd.f32 %v119, %v543
    %v545 = vpop.f32.mrf.mxu0
    %v546 = vadd.f32 %v123, %v545
    %v547 = vpop.f32.mrf.mxu0
    %v548 = vpop.f32.mrf.mxu0
    %549 = vdwg.mxu0
    %550 = vmatprep.subr.bf16.mxu0 %v401
    %551 = vmatpush1.bf16.msra.mxu0 %v400
    %552 = vmatprep.subr.bf16.mxu0 %v393
    %553 = vmatpush1.bf16.msra.mxu0 %v392
    %554 = vmatprep.subr.bf16.mxu0 %v385
    %555 = vmatpush1.bf16.msra.mxu0 %v384
    %556 = vmatprep.subr.bf16.mxu0 %v377
    %557 = vmatpush1.bf16.msra.mxu0 %v376
    %558 = vmatprep.subr.bf16.mxu0 %v369
    %559 = vmatpush1.bf16.msra.mxu0 %v368
    %560 = vmatprep.subr.bf16.mxu0 %v361
    %561 = vmatpush1.bf16.msra.mxu0 %v360
    %562 = vmatprep.subr.bf16.mxu0 %v353
    %563 = vmatpush1.bf16.msra.mxu0 %v352
    %564 = vmatprep.subr.bf16.mxu0 %v345
    %565 = vmatpush1.bf16.msra.mxu0 %v344
    %566 = vmatprep.subr.bf16.mxu0 0
    %567 = vmatpush2.bf16.msra.mxu0 0
    %568 = vmatprep.subr.bf16.mxu0 0
    %569 = vmatpush2.bf16.msra.mxu0 0
    %570 = vmatprep.subr.bf16.mxu0 0
    %571 = vmatpush2.bf16.msra.mxu0 0
    %572 = vmatprep.subr.bf16.mxu0 0
    %573 = vmatpush2.bf16.msra.mxu0 0
    %574 = vmatprep.subr.bf16.mxu0 0
    %575 = vmatpush2.bf16.msra.mxu0 0
    %576 = vmatprep.subr.bf16.mxu0 0
    %577 = vmatpush2.bf16.msra.mxu0 0
    %578 = vmatprep.subr.bf16.mxu0 0
    %579 = vmatpush2.bf16.msra.mxu0 0
    %580 = vmatprep.subr.bf16.mxu0 0
    %581 = vmatpush2.bf16.msra.mxu0 0
    %582 = vmatprep.mubr.bf16.mxu0 0
    %583 = vmatmul.mubr.bf16.gmra.mxu0 %v41
    %v584 = vpop.f32.mrf.mxu0
    %v585 = vadd.f32 %v127, %v584
    %v586 = vpop.f32.mrf.mxu0
    %v587 = vadd.f32 %v131, %v586
    %v588 = vpop.f32.mrf.mxu0
    %v589 = vpop.f32.mrf.mxu0
    %590 = vdwg.mxu0
    %591 = vmatprep.subr.bf16.mxu0 %v403
    %592 = vmatpush1.bf16.msra.mxu0 %v402
    %593 = vmatprep.subr.bf16.mxu0 %v395
    %594 = vmatpush1.bf16.msra.mxu0 %v394
    %595 = vmatprep.subr.bf16.mxu0 %v387
    %596 = vmatpush1.bf16.msra.mxu0 %v386
    %597 = vmatprep.subr.bf16.mxu0 %v379
    %598 = vmatpush1.bf16.msra.mxu0 %v378
    %599 = vmatprep.subr.bf16.mxu0 %v371
    %600 = vmatpush1.bf16.msra.mxu0 %v370
    %601 = vmatprep.subr.bf16.mxu0 %v363
    %602 = vmatpush1.bf16.msra.mxu0 %v362
    %603 = vmatprep.subr.bf16.mxu0 %v355
    %604 = vmatpush1.bf16.msra.mxu0 %v354
    %605 = vmatprep.subr.bf16.mxu0 %v347
    %606 = vmatpush1.bf16.msra.mxu0 %v346
    %607 = vmatprep.subr.bf16.mxu0 0
    %608 = vmatpush2.bf16.msra.mxu0 0
    %609 = vmatprep.subr.bf16.mxu0 0
    %610 = vmatpush2.bf16.msra.mxu0 0
    %611 = vmatprep.subr.bf16.mxu0 0
    %612 = vmatpush2.bf16.msra.mxu0 0
    %613 = vmatprep.subr.bf16.mxu0 0
    %614 = vmatpush2.bf16.msra.mxu0 0
    %615 = vmatprep.subr.bf16.mxu0 0
    %616 = vmatpush2.bf16.msra.mxu0 0
    %617 = vmatprep.subr.bf16.mxu0 0
    %618 = vmatpush2.bf16.msra.mxu0 0
    %619 = vmatprep.subr.bf16.mxu0 0
    %620 = vmatpush2.bf16.msra.mxu0 0
    %621 = vmatprep.subr.bf16.mxu0 0
    %622 = vmatpush2.bf16.msra.mxu0 0
    %623 = vmatprep.mubr.bf16.mxu0 0
    %624 = vmatmul.mubr.bf16.gmra.mxu0 %v41
    %v625 = vpop.f32.mrf.mxu0
    %v626 = vadd.f32 %v135, %v625
    %v627 = vpop.f32.mrf.mxu0
    %v628 = vadd.f32 %v139, %v627
    %v629 = vpop.f32.mrf.mxu0
    %v630 = vpop.f32.mrf.mxu0
    %631 = vdwg.mxu0
    %v632 = vmax.f32 %v503, 0.0
    %v633 = vmax.f32 %v505, 0.0
    %v634 = vmax.f32 %v544, 0.0
    %v635 = vmax.f32 %v546, 0.0
    %v636 = vmax.f32 %v585, 0.0
    %v637 = vmax.f32 %v587, 0.0
    %v638 = vmax.f32 %v626, 0.0
    %v639 = vmax.f32 %v628, 0.0
    %v640 = vpack.c.bf16 %v632, %v632
    %v641 = vpack.c.bf16 %v633, %v633
    %v642 = vpack.c.bf16 %v634, %v634
    %v643 = vpack.c.bf16 %v635, %v635
    %v644 = vpack.c.bf16 %v636, %v636
    %v645 = vpack.c.bf16 %v637, %v637
    %v646 = vpack.c.bf16 %v638, %v638
    %v647 = vpack.c.bf16 %v639, %v639
    %v656 = vunpack.c.l.b16 %v640
    %v657 = vunpack.c.l.b16 %v641
    %v658 = vunpack.c.l.b16 %v642
    %v659 = vunpack.c.l.b16 %v643
    %v660 = vunpack.c.l.b16 %v644
    %v661 = vunpack.c.l.b16 %v645
    %v662 = vunpack.c.l.b16 %v646
    %v663 = vunpack.c.l.b16 %v647
    %v664 = vpack.c.b16 %v657, %v656
    %v665 = vpack.c.b16 %v659, %v658
    %v666 = vpack.c.b16 %v661, %v660
    %v667 = vpack.c.b16 %v663, %v662
    %672 = vst [vmem:[%s3] sm:$0xff] %v664
    %673 = vst [vmem:[%s3 + $0x8] sm:$0xff] %v665
    %674 = vst [vmem:[%s3 + $0x10] sm:$0xff] %v666
    %675 = vst [vmem:[%s3 + $0x18] sm:$0xff] %v667
    // Predicated region
    $region22: #{policy_forward.3} parent=1 // pred_check
      _
    $region23: #{policy_forward.3} parent=1 // pred_check_branch
      %677 = sbr.rel (0) target = $region25
    $region24: #{policy_forward.3} parent=1 // pred_region
      _
    $region25: #{policy_forward.3} parent=1 // pred_fallthru
      _
    // Predicated region
    $region26: #{policy_forward.3} parent=1 // pred_check
      _
    $region27: #{policy_forward.3} parent=1 // pred_check_branch
      %679 = sbr.rel (0) target = $region29
    $region28: #{policy_forward.3} parent=1 // pred_region
      _
    $region29: #{policy_forward.3} parent=1 // pred_fallthru
      _
    %680 = vsyncpa [#allocation3], 1
    %681 = vsyncpa [#allocation5], 1

// kernel: policy_forward.4
$region0: #{policy_forward.4}
  #allocation0 [shape = 'u32[]', space=smem, size = 0x4, offset = 0x4, fixed_abs, tag = 'smem constant byte address 0x4 - core index']
  #allocation1 [shape = 'u32[144,128]{1,0:T(1,128)}', space=vmem, size = 0x12000, scoped, tag = 'internal scratch']
  %s0 = inlined_call_operand.vmem [shape: bf16[8,1024], index: 0, kind: input, shape index: {}]
  %s1 = inlined_call_operand.hbm [shape: bf16[1024,1024], index: 1, kind: input, shape index: {}]
  %s2 = inlined_call_operand.hbm [shape: f32[1,1024], index: 2, kind: input, shape index: {}]
  %s3 = inlined_call_operand.hbm [shape: bf16[1024,256], index: 3, kind: input, shape index: {}]
  %s4 = inlined_call_operand.vmem [shape: f32[2,8,256], index: 4, kind: output, shape index: {}]
  %s5 = sld [smem:[#allocation0]]
  $region61: #{policy_forward.4} parent=0
    _
  %s7 = ssub.s32 1, %s5
  %s8 = scalar_select 0, %s7, %s5
  $region1: #{policy_forward.4} parent=0
    #allocation2 [shape = 'u8[2097152]{0}', space=vmem, size = 0x200000, scoped, tag = 'input window, operand 1']
    #allocation3 [shape = 's32[2]{0}', space=sflag, size = 0x8, scoped, tag = 'scoped memory for policy_forward.4']
    #allocation4 [shape = 'u8[4096]{0}', space=vmem, size = 0x1000, scoped, tag = 'input window, operand 2']
    #allocation5 [shape = 's32[2]{0}', space=sflag, size = 0x8, scoped, tag = 'scoped memory for policy_forward.4']
    #allocation6 [shape = 'u8[524288]{0}', space=vmem, size = 0x80000, scoped, tag = 'input window, operand 3']
    %9 = vsyncpa [#allocation3], 0
    %s10 = scalar_lea.sflag [#allocation3], 1
    %11 = vsyncpa %s10, 0
    %12 = vsyncpa [#allocation5], 0
    %s13 = scalar_lea.sflag [#allocation5], 1
    %14 = vsyncpa %s13, 0
    loop: start=0, step=1, limit=4
    $region2: #{policy_forward.4} parent=1 // loop_pre_header
      _
    $region3: #{policy_forward.4} parent=1 // loop_header
      %s16 = sphi 0, %s20
      %p17 = scmp.ge.s32.totalorder %s16, 4
      %s24 = sphi 0, %s24
      %s26 = sphi 0, %s24
      %s27 = sphi 0, %s26
      %s41 = sphi 0, %s27
      %s47 = sphi 0, %s49
      %s50 = sphi 0, %s47
      %s51 = sphi 0, %s50
      %s67 = sphi 0, %s51
      %s73 = sphi 0, %s75
      %s76 = sphi 0, %s73
      %s77 = sphi 0, %s76
      %s93 = sphi 0, %s77
      %s99 = sphi 0, %s101
      %s102 = sphi 0, %s99
      %s103 = sphi 0, %s102
      %s119 = sphi 0, %s103
      %s125 = sphi 0, %s127
      %s128 = sphi 0, %s125
      %s129 = sphi 0, %s128
      %s145 = sphi 0, %s129
    $region4: #{policy_forward.4} parent=1 // loop_header_branch
      %19 = sbr.rel (%p17) target = $region8
    $region5: #{policy_forward.4} parent=1 // loop_body
      %s21 = ssub.s32 %s16, 1
      %s22 = ssub.s32 %s16, 2
      %s23 = sadd.s32 %s16, 1
      %s25 = sadd.s32 %s24, 1
      %p28 = scmp.eq.s32.totalorder %s16, 1
      %p29 = scmp.ne.s32.totalorder %s24, %s26
      %p30 = scmp.eq.s32.totalorder %s16, 0
      %p31 = por %p29, %p30
      %p32 = scmp.ne.s32.totalorder %s24, %s26
      %p33 = scmp.eq.s32.totalorder %s21, 1
      %p34 = por %p32, %p33
      %p35 = scmp.ne.s32.totalorder %s26, %s27
      %p36 = scmp.eq.s32.totalorder %s21, 0
      %p37 = por %p35, %p36
      %p38 = scmp.ne.s32.totalorder %s26, %s27
      %p39 = scmp.eq.s32.totalorder %s22, 1
      %p40 = por %p38, %p39
      %p42 = scmp.ne.s32.totalorder %s27, %s41
      %p43 = scmp.eq.s32.totalorder %s22, 0
      %p44 = por %p42, %p43
      %s45 = ssub.s32 %s16, %s23
      %p46 = scmp.eq.s32.totalorder %s45, 0
      %s48 = sadd.s32 %s47, 1
      %s49 = scalar_select %p46, %s47, %s48
      %p52 = pneg %p46
      %p53 = scmp.eq.s32.totalorder %s16, 1
      %p54 = por %p52, %p53
      %p55 = scmp.ne.s32.totalorder %s47, %s50
      %p56 = scmp.eq.s32.totalorder %s16, 0
      %p57 = por %p55, %p56
      %p58 = scmp.ne.s32.totalorder %s47, %s50
      %p59 = scmp.eq.s32.totalorder %s21, 1
      %p60 = por %p58, %p59
      %p61 = scmp.ne.s32.totalorder %s50, %s51
      %p62 = scmp.eq.s32.totalorder %s21, 0
      %p63 = por %p61, %p62
      %p64 = scmp.ne.s32.totalorder %s50, %s51
      %p65 = scmp.eq.s32.totalorder %s22, 1
      %p66 = por %p64, %p65
      %p68 = scmp.ne.s32.totalorder %s51, %s67
      %p69 = scmp.eq.s32.totalorder %s22, 0
      %p70 = por %p68, %p69
      %s71 = ssub.s32 %s16, %s23
      %p72 = scmp.eq.s32.totalorder %s71, 0
      %s74 = sadd.s32 %s73, 1
      %s75 = scalar_select %p72, %s73, %s74
      %p78 = pneg %p72
      %p79 = scmp.eq.s32.totalorder %s16, 1
      %p80 = por %p78, %p79
      %p81 = scmp.ne.s32.totalorder %s73, %s76
      %p82 = scmp.eq.s32.totalorder %s16, 0
      %p83 = por %p81, %p82
      %p84 = scmp.ne.s32.totalorder %s73, %s76
      %p85 = scmp.eq.s32.totalorder %s21, 1
      %p86 = por %p84, %p85
      %p87 = scmp.ne.s32.totalorder %s76, %s77
      %p88 = scmp.eq.s32.totalorder %s21, 0
      %p89 = por %p87, %p88
      %p90 = scmp.ne.s32.totalorder %s76, %s77
      %p91 = scmp.eq.s32.totalorder %s22, 1
      %p92 = por %p90, %p91
      %p94 = scmp.ne.s32.totalorder %s77, %s93
      %p95 = scmp.eq.s32.totalorder %s22, 0
      %p96 = por %p94, %p95
      %s97 = ssub.s32 %s16, %s23
      %p98 = scmp.eq.s32.totalorder %s97, 0
      %s100 = sadd.s32 %s99, 1
      %s101 = scalar_select %p98, %s99, %s100
      %p104 = pneg %p98
      %p105 = scmp.eq.s32.totalorder %s16, 1
      %p106 = por %p104, %p105
      %p107 = scmp.ne.s32.totalorder %s99, %s102
      %p108 = scmp.eq.s32.totalorder %s16, 0
      %p109 = por %p107, %p108
      %p110 = scmp.ne.s32.totalorder %s99, %s102
      %p111 = scmp.eq.s32.totalorder %s21, 1
      %p112 = por %p110, %p111
      %p113 = scmp.ne.s32.totalorder %s102, %s103
      %p114 = scmp.eq.s32.totalorder %s21, 0
      %p115 = por %p113, %p114
      %p116 = scmp.ne.s32.totalorder %s102, %s103
      %p117 = scmp.eq.s32.totalorder %s22, 1
      %p118 = por %p116, %p117
      %p120 = scmp.ne.s32.totalorder %s103, %s119
      %p121 = scmp.eq.s32.totalorder %s22, 0
      %p122 = por %p120, %p121
      %s123 = ssub.s32 %s16, %s23
      %p124 = scmp.eq.s32.totalorder %s123, 0
      %s126 = sadd.s32 %s125, 1
      %s127 = scalar_select %p124, %s125, %s126
      %p130 = pneg %p124
      %p131 = scmp.eq.s32.totalorder %s16, 1
      %p132 = por %p130, %p131
      %p133 = scmp.ne.s32.totalorder %s125, %s128
      %p134 = scmp.eq.s32.totalorder %s16, 0
      %p135 = por %p133, %p134
      %p136 = scmp.ne.s32.totalorder %s125, %s128
      %p137 = scmp.eq.s32.totalorder %s21, 1
      %p138 = por %p136, %p137
      %p139 = scmp.ne.s32.totalorder %s128, %s129
      %p140 = scmp.eq.s32.totalorder %s21, 0
      %p141 = por %p139, %p140
      %p142 = scmp.ne.s32.totalorder %s128, %s129
      %p143 = scmp.eq.s32.totalorder %s22, 1
      %p144 = por %p142, %p143
      %p146 = scmp.ne.s32.totalorder %s129, %s145
      %p147 = scmp.eq.s32.totalorder %s22, 0
      %p148 = por %p146, %p147
      %p149 = scmp.le.s32.totalorder 1, %s16
      %p150 = scmp.lt.s32.totalorder %s16, 3
      %p151 = pnand %p149, %p150
      %p152 = pneg %p151
      // Predicated region
      $region9: #{policy_forward.4} parent=5 // pred_check
        _
      $region10: #{policy_forward.4} parent=5 // pred_check_branch
        %154 = sbr.rel (%p151) target = $region12
      $region11: #{policy_forward.4} parent=5 // pred_region
        %s155 = ssub.s32 %s16, 1
        // Predicated region
        $region13: #{policy_forward.4} parent=11 // pred_check
          %p156 = pneg %p37
        $region14: #{policy_forward.4} parent=11 // pred_check_branch
          %158 = sbr.rel (%p156) target = $region16
        $region15: #{policy_forward.4} parent=11 // pred_region
          _
        $region16: #{policy_forward.4} parent=11 // pred_fallthru
          _
      $region12: #{policy_forward.4} parent=5 // pred_fallthru
        _
      %p159 = scmp.lt.s32.totalorder %s16, 2
      // Predicated region
      $region17: #{policy_forward.4} parent=5 // pred_check
        %p160 = pneg %p159
      $region18: #{policy_forward.4} parent=5 // pred_check_branch
        %162 = sbr.rel (%p160) target = $region20
      $region19: #{policy_forward.4} parent=5 // pred_region
        // Predicated region
        $region21: #{policy_forward.4} parent=19 // pred_check
          %p163 = pneg %p57
        $region22: #{policy_forward.4} parent=19 // pred_check_branch
          %165 = sbr.rel (%p163) target = $region24
        $region23: #{policy_forward.4} parent=19 // pred_region
          %s166 = sand.u32 %s47, 1
          %s167 = scalar_lea.sflag [#allocation3], %s166
          %s168 = sand.u32 %s47, 1
          %s169 = smul.addr %s168, 2048
          %s170 = scalar_lea.vmem [#allocation2], %s169
          %s171 = smul.u32 4, %s16
          %s173 = ssub.s32 32768, 32768
          %174 = vsyncadd %s167, %s173
          %s175 = smul.addr %s171, 64
          %s176 = scalar_lea.hbm %s1, %s175
          %s177 = sshll.u32 %s170, 4
          %s178 = int_to_ptr.vmem [resolvable:$true] %s177
          %183 = dma.hbm_to_vmem [thread:$0]  %s176, 32768, %s178, %s167, 512, 256, 16
        $region24: #{policy_forward.4} parent=19 // pred_fallthru
          _
        // Predicated region
        $region25: #{policy_forward.4} parent=19 // pred_check
          %p184 = pneg %p83
        $region26: #{policy_forward.4} parent=19 // pred_check_branch
          %186 = sbr.rel (%p184) target = $region28
        $region27: #{policy_forward.4} parent=19 // pred_region
          %s187 = sand.u32 %s16, 1
          %s188 = scalar_lea.sflag [#allocation5], %s187
          %s189 = sand.u32 %s73, 1
          %s190 = smul.addr %s189, 4
          %s191 = scalar_lea.vmem [#allocation4], %s190
          %s192 = smul.u32 4, %s16
          %s194 = ssub.s32 64, 64
          %195 = vsyncadd %s188, %s194
          %s196 = smul.addr %s192, 16
          %s197 = scalar_lea.hbm %s2, %s196
          %s199 = sshll.u32 %s191, 4
          %s200 = int_to_ptr.vmem [resolvable:$true] %s199
          %202 = dma.hbm_to_vmem [thread:$0]  %s197, 64, %s200, %s188
        $region28: #{policy_forward.4} parent=19 // pred_fallthru
          _
        // Predicated region
        $region29: #{policy_forward.4} parent=19 // pred_check
          %p203 = pneg %p109
        $region30: #{policy_forward.4} parent=19 // pred_check_branch
          %205 = sbr.rel (%p203) target = $region32
        $region31: #{policy_forward.4} parent=19 // pred_region
          %s206 = sand.u32 %s16, 1
          %s207 = scalar_lea.sflag [#allocation5], %s206
          %s208 = sand.u32 %s99, 1
          %s209 = smul.addr %s208, 512
          %s210 = scalar_lea.vmem [#allocation6], %s209
          %s211 = smul.u32 64, %s16
          %s213 = ssub.s32 8192, 8192
          %214 = vsyncadd %s207, %s213
          %s215 = smul.addr %s211, 2
          %s216 = smul.addr %s215, 64
          %s217 = scalar_lea.hbm %s3, %s216
          %s218 = sshll.u32 %s210, 4
          %s219 = int_to_ptr.vmem [resolvable:$true] %s218
          %224 = dma.hbm_to_vmem [thread:$0]  %s217, 8192, %s219, %s207, 128, 128, 8
        $region32: #{policy_forward.4} parent=19 // pred_fallthru
          _
      $region20: #{policy_forward.4} parent=5 // pred_fallthru
        _
      %p225 = scmp.le.s32.totalorder 1, %s16
      %p226 = scmp.lt.s32.totalorder %s16, 3
      %p227 = pnand %p225, %p226
      %p228 = pneg %p227
      // Predicated region
      $region33: #{policy_forward.4} parent=5 // pred_check
        _
      $region34: #{policy_forward.4} parent=5 // pred_check_branch
        %230 = sbr.rel (%p227) target = $region36
      $region35: #{policy_forward.4} parent=5 // pred_region
        %s231 = ssub.s32 %s16, 1
        %s232 = sand.u32 %s50, 1
        %s233 = scalar_lea.sflag [#allocation3], %s232
        %s234 = sand.u32 %s50, 1
        %s235 = smul.addr %s234, 2048
        %s236 = scalar_lea.vmem [#allocation2], %s235
        // Predicated region
        $region37: #{policy_forward.4} parent=35 // pred_check
          %p237 = pneg %p63
        $region38: #{policy_forward.4} parent=35 // pred_check_branch
          %239 = sbr.rel (%p237) target = $region40
        $region39: #{policy_forward.4} parent=35 // pred_region
          %240 = dma.done %s233, 32768
        $region40: #{policy_forward.4} parent=35 // pred_fallthru
          _
        %s241 = sand.u32 %s21, 1
        %s242 = scalar_lea.sflag [#allocation5], %s241
        %s243 = sand.u32 %s76, 1
        %s244 = smul.addr %s243, 4
        %s245 = scalar_lea.vmem [#allocation4], %s244
        // Predicated region
        $region41: #{policy_forward.4} parent=35 // pred_check
          %p246 = pneg %p89
        $region42: #{policy_forward.4} parent=35 // pred_check_branch
          %248 = sbr.rel (%p246) target = $region44
        $region43: #{policy_forward.4} parent=35 // pred_region
          %249 = dma.done %s242, 64
        $region44: #{policy_forward.4} parent=35 // pred_fallthru
          _
        %s250 = sand.u32 %s21, 1
        %s251 = scalar_lea.sflag [#allocation5], %s250
        %s252 = sand.u32 %s102, 1
        %s253 = smul.addr %s252, 512
        %s254 = scalar_lea.vmem [#allocation6], %s253
        // Predicated region
        $region45: #{policy_forward.4} parent=35 // pred_check
          %p255 = pneg %p115
        $region46: #{policy_forward.4} parent=35 // pred_check_branch
          %257 = sbr.rel (%p255) target = $region48
        $region47: #{policy_forward.4} parent=35 // pred_region
          %258 = dma.done %s251, 8192
        $region48: #{policy_forward.4} parent=35 // pred_fallthru
          _
        %p259 = pneg %p37
        %p260 = pneg %p34
        %s261 = sand.u32 %s50, 1
        %s262 = scalar_lea.sflag [#allocation3], %s261
        %s263 = sand.u32 %s50, 1
        %s264 = smul.addr %s263, 2048
        %s265 = scalar_lea.vmem [#allocation2], %s264
        %p266 = pneg %p63
        %p267 = pneg %p60
        %s268 = sand.u32 %s21, 1
        %s269 = scalar_lea.sflag [#allocation5], %s268
        %s270 = sand.u32 %s76, 1
        %s271 = smul.addr %s270, 4
        %s272 = scalar_lea.vmem [#allocation4], %s271
        %p273 = pneg %p89
        %p274 = pneg %p86
        %s275 = sand.u32 %s21, 1
        %s276 = scalar_lea.sflag [#allocation5], %s275
        %s277 = sand.u32 %s102, 1
        %s278 = smul.addr %s277, 512
        %s279 = scalar_lea.vmem [#allocation6], %s278
        %p280 = pneg %p115
        %p281 = pneg %p112
        %p282 = pneg %p141
        %p283 = pneg %p138
        %p284 = scmp.lt.s32.totalorder %s21, 1
        %s285 = scalar_select %p284, %s21, 1
        %s286 = smul.addr %s285, 2
        %s287 = smul.addr %s286, 8
        %s288 = scalar_lea.vmem %s4, %s287
        %s289 = smul.u32 4, %s21
        %s290 = smul.u32 4, %s21
        %s291 = smul.u32 64, %s21
        %p292 = scmp.lt.s32.totalorder %s21, 1
        %s293 = scalar_select %p292, %s21, 1
        %s294 = smul.addr %s293, 2
        %s295 = smul.addr %s294, 8
        %s296 = scalar_lea.vmem %s4, %s295
        %v297 = vld [vmem:[%s0] sm:$0xff]
        %v298 = vld [vmem:[%s0 + $0x8] sm:$0xff]
        %v299 = vld [vmem:[%s0 + $0x10] sm:$0xff]
        %v300 = vld [vmem:[%s0 + $0x18] sm:$0xff]
        %v301 = vld [vmem:[%s236] sm:$0xff]
        %v302 = vld [vmem:[%s236 + $0x8] sm:$0xff]
        %v303 = vld [vmem:[%s236 + $0x10] sm:$0xff]
        %v304 = vld [vmem:[%s236 + $0x18] sm:$0xff]
        %v305 = vld [vmem:[%s236 + $0x20] sm:$0xff]
        %v306 = vld [vmem:[%s236 + $0x28] sm:$0xff]
        %v307 = vld [vmem:[%s236 + $0x30] sm:$0xff]
        %v308 = vld [vmem:[%s236 + $0x38] sm:$0xff]
        %v309 = vld [vmem:[%s236 + $0x40] sm:$0xff]
        %v310 = vld [vmem:[%s236 + $0x48] sm:$0xff]
        %v311 = vld [vmem:[%s236 + $0x50] sm:$0xff]
        %v312 = vld [vmem:[%s236 + $0x58] sm:$0xff]
        %v313 = vld [vmem:[%s236 + $0x60] sm:$0xff]
        %v314 = vld [vmem:[%s236 + $0x68] sm:$0xff]
        %v315 = vld [vmem:[%s236 + $0x70] sm:$0xff]
        %v316 = vld [vmem:[%s236 + $0x78] sm:$0xff]
        %v317 = vld [vmem:[%s236 + $0x80] sm:$0xff]
        %v318 = vld [vmem:[%s236 + $0x88] sm:$0xff]
        %v319 = vld [vmem:[%s236 + $0x90] sm:$0xff]
        %v320 = vld [vmem:[%s236 + $0x98] sm:$0xff]
        %v321 = vld [vmem:[%s236 + $0xa0] sm:$0xff]
        %v322 = vld [vmem:[%s236 + $0xa8] sm:$0xff]
        %v323 = vld [vmem:[%s236 + $0xb0] sm:$0xff]
        %v324 = vld [vmem:[%s236 + $0xb8] sm:$0xff]
        %v325 = vld [vmem:[%s236 + $0xc0] sm:$0xff]
        %v326 = vld [vmem:[%s236 + $0xc8] sm:$0xff]
        %v327 = vld [vmem:[%s236 + $0xd0] sm:$0xff]
        %v328 = vld [vmem:[%s236 + $0xd8] sm:$0xff]
        %v329 = vld [vmem:[%s236 + $0xe0] sm:$0xff]
        %v330 = vld [vmem:[%s236 + $0xe8] sm:$0xff]
        %v331 = vld [vmem:[%s236 + $0xf0] sm:$0xff]
        %v332 = vld [vmem:[%s236 + $0xf8] sm:$0xff]
        %v333 = vld [vmem:[%s236 + $0x100] sm:$0xff]
        %v334 = vld [vmem:[%s236 + $0x108] sm:$0xff]
        %v335 = vld [vmem:[%s236 + $0x110] sm:$0xff]
        %v336 = vld [vmem:[%s236 + $0x118] sm:$0xff]
        %v337 = vld [vmem:[%s236 + $0x120] sm:$0xff]
        %v338 = vld [vmem:[%s236 + $0x128] sm:$0xff]
        %v339 = vld [vmem:[%s236 + $0x130] sm:$0xff]
        %v340 = vld [vmem:[%s236 + $0x138] sm:$0xff]
        %v341 = vld [vmem:[%s236 + $0x140] sm:$0xff]
        %v342 = vld [vmem:[%s236 + $0x148] sm:$0xff]
        %v343 = vld [vmem:[%s236 + $0x150] sm:$0xff]
        %v344 = vld [vmem:[%s236 + $0x158] sm:$0xff]
        %v345 = vld [vmem:[%s236 + $0x160] sm:$0xff]
        %v346 = vld [vmem:[%s236 + $0x168] sm:$0xff]
        %v347 = vld [vmem:[%s236 + $0x170] sm:$0xff]
        %v348 = vld [vmem:[%s236 + $0x178] sm:$0xff]
        %v349 = vld [vmem:[%s236 + $0x180] sm:$0xff]
        %v350 = vld [vmem:[%s236 + $0x188] sm:$0xff]
        %v351 = vld [vmem:[%s236 + $0x190] sm:$0xff]
        %v352 = vld [vmem:[%s236 + $0x198] sm:$0xff]
        %v353 = vld [vmem:[%s236 + $0x1a0] sm:$0xff]
        %v354 = vld [vmem:[%s236 + $0x1a8] sm:$0xff]
        %v355 = vld [vmem:[%s236 + $0x1b0] sm:$0xff]
        %v356 = vld [vmem:[%s236 + $0x1b8] sm:$0xff]
        %v357 = vld [vmem:[%s236 + $0x1c0] sm:$0xff]
        %v358 = vld [vmem:[%s236 + $0x1c8] sm:$0xff]
        %v359 = vld [vmem:[%s236 + $0x1d0] sm:$0xff]
        %v360 = vld [vmem:[%s236 + $0x1d8] sm:$0xff]
        %v361 = vld [vmem:[%s236 + $0x1e0] sm:$0xff]
        %v362 = vld [vmem:[%s236 + $0x1e8] sm:$0xff]
        %v363 = vld [vmem:[%s236 + $0x1f0] sm:$0xff]
        %v364 = vld [vmem:[%s236 + $0x1f8] sm:$0xff]
        %v365 = vld [vmem:[%s236 + $0x200] sm:$0xff]
        %v366 = vld [vmem:[%s236 + $0x208] sm:$0xff]
        %v367 = vld [vmem:[%s236 + $0x210] sm:$0xff]
        %v368 = vld [vmem:[%s236 + $0x218] sm:$0xff]
        %v369 = vld [vmem:[%s236 + $0x220] sm:$0xff]
        %v370 = vld [vmem:[%s236 + $0x228] sm:$0xff]
        %v371 = vld [vmem:[%s236 + $0x230] sm:$0xff]
        %v372 = vld [vmem:[%s236 + $0x238] sm:$0xff]
        %v373 = vld [vmem:[%s236 + $0x240] sm:$0xff]
        %v374 = vld [vmem:[%s236 + $0x248] sm:$0xff]
        %v375 = vld [vmem:[%s236 + $0x250] sm:$0xff]
        %v376 = vld [vmem:[%s236 + $0x258] sm:$0xff]
        %v377 = vld [vmem:[%s236 + $0x260] sm:$0xff]
        %v378 = vld [vmem:[%s236 + $0x268] sm:$0xff]
        %v379 = vld [vmem:[%s236 + $0x270] sm:$0xff]
        %v380 = vld [vmem:[%s236 + $0x278] sm:$0xff]
        %v381 = vld [vmem:[%s236 + $0x280] sm:$0xff]
        %v382 = vld [vmem:[%s236 + $0x288] sm:$0xff]
        %v383 = vld [vmem:[%s236 + $0x290] sm:$0xff]
        %v384 = vld [vmem:[%s236 + $0x298] sm:$0xff]
        %v385 = vld [vmem:[%s236 + $0x2a0] sm:$0xff]
        %v386 = vld [vmem:[%s236 + $0x2a8] sm:$0xff]
        %v387 = vld [vmem:[%s236 + $0x2b0] sm:$0xff]
        %v388 = vld [vmem:[%s236 + $0x2b8] sm:$0xff]
        %v389 = vld [vmem:[%s236 + $0x2c0] sm:$0xff]
        %v390 = vld [vmem:[%s236 + $0x2c8] sm:$0xff]
        %v391 = vld [vmem:[%s236 + $0x2d0] sm:$0xff]
        %v392 = vld [vmem:[%s236 + $0x2d8] sm:$0xff]
        %v393 = vld [vmem:[%s236 + $0x2e0] sm:$0xff]
        %v394 = vld [vmem:[%s236 + $0x2e8] sm:$0xff]
        %v395 = vld [vmem:[%s236 + $0x2f0] sm:$0xff]
        %v396 = vld [vmem:[%s236 + $0x2f8] sm:$0xff]
        %v397 = vld [vmem:[%s236 + $0x300] sm:$0xff]
        %v398 = vld [vmem:[%s236 + $0x308] sm:$0xff]
        %v399 = vld [vmem:[%s236 + $0x310] sm:$0xff]
        %v400 = vld [vmem:[%s236 + $0x318] sm:$0xff]
        %v401 = vld [vmem:[%s236 + $0x320] sm:$0xff]
        %v402 = vld [vmem:[%s236 + $0x328] sm:$0xff]
        %v403 = vld [vmem:[%s236 + $0x330] sm:$0xff]
        %v404 = vld [vmem:[%s236 + $0x338] sm:$0xff]
        %v405 = vld [vmem:[%s236 + $0x340] sm:$0xff]
        %v406 = vld [vmem:[%s236 + $0x348] sm:$0xff]
        %v407 = vld [vmem:[%s236 + $0x350] sm:$0xff]
        %v408 = vld [vmem:[%s236 + $0x358] sm:$0xff]
        %v409 = vld [vmem:[%s236 + $0x360] sm:$0xff]
        %v410 = vld [vmem:[%s236 + $0x368] sm:$0xff]
        %v411 = vld [vmem:[%s236 + $0x370] sm:$0xff]
        %v412 = vld [vmem:[%s236 + $0x378] sm:$0xff]
        %v413 = vld [vmem:[%s236 + $0x380] sm:$0xff]
        %v414 = vld [vmem:[%s236 + $0x388] sm:$0xff]
        %v415 = vld [vmem:[%s236 + $0x390] sm:$0xff]
        %v416 = vld [vmem:[%s236 + $0x398] sm:$0xff]
        %v417 = vld [vmem:[%s236 + $0x3a0] sm:$0xff]
        %v418 = vld [vmem:[%s236 + $0x3a8] sm:$0xff]
        %v419 = vld [vmem:[%s236 + $0x3b0] sm:$0xff]
        %v420 = vld [vmem:[%s236 + $0x3b8] sm:$0xff]
        %v421 = vld [vmem:[%s236 + $0x3c0] sm:$0xff]
        %v422 = vld [vmem:[%s236 + $0x3c8] sm:$0xff]
        %v423 = vld [vmem:[%s236 + $0x3d0] sm:$0xff]
        %v424 = vld [vmem:[%s236 + $0x3d8] sm:$0xff]
        %v425 = vld [vmem:[%s236 + $0x3e0] sm:$0xff]
        %v426 = vld [vmem:[%s236 + $0x3e8] sm:$0xff]
        %v427 = vld [vmem:[%s236 + $0x3f0] sm:$0xff]
        %v428 = vld [vmem:[%s236 + $0x3f8] sm:$0xff]
        %v429 = vld [vmem:[%s236 + $0x400] sm:$0xff]
        %v430 = vld [vmem:[%s236 + $0x408] sm:$0xff]
        %v431 = vld [vmem:[%s236 + $0x410] sm:$0xff]
        %v432 = vld [vmem:[%s236 + $0x418] sm:$0xff]
        %v433 = vld [vmem:[%s236 + $0x420] sm:$0xff]
        %v434 = vld [vmem:[%s236 + $0x428] sm:$0xff]
        %v435 = vld [vmem:[%s236 + $0x430] sm:$0xff]
        %v436 = vld [vmem:[%s236 + $0x438] sm:$0xff]
        %v437 = vld [vmem:[%s236 + $0x440] sm:$0xff]
        %v438 = vld [vmem:[%s236 + $0x448] sm:$0xff]
        %v439 = vld [vmem:[%s236 + $0x450] sm:$0xff]
        %v440 = vld [vmem:[%s236 + $0x458] sm:$0xff]
        %v441 = vld [vmem:[%s236 + $0x460] sm:$0xff]
        %v442 = vld [vmem:[%s236 + $0x468] sm:$0xff]
        %v443 = vld [vmem:[%s236 + $0x470] sm:$0xff]
        %v444 = vld [vmem:[%s236 + $0x478] sm:$0xff]
        %v445 = vld [vmem:[%s236 + $0x480] sm:$0xff]
        %v446 = vld [vmem:[%s236 + $0x488] sm:$0xff]
        %v447 = vld [vmem:[%s236 + $0x490] sm:$0xff]
        %v448 = vld [vmem:[%s236 + $0x498] sm:$0xff]
        %v449 = vld [vmem:[%s236 + $0x4a0] sm:$0xff]
        %v450 = vld [vmem:[%s236 + $0x4a8] sm:$0xff]
        %v451 = vld [vmem:[%s236 + $0x4b0] sm:$0xff]
        %v452 = vld [vmem:[%s236 + $0x4b8] sm:$0xff]
        %v453 = vld [vmem:[%s236 + $0x4c0] sm:$0xff]
        %v454 = vld [vmem:[%s236 + $0x4c8] sm:$0xff]
        %v455 = vld [vmem:[%s236 + $0x4d0] sm:$0xff]
        %v456 = vld [vmem:[%s236 + $0x4d8] sm:$0xff]
        %v457 = vld [vmem:[%s236 + $0x4e0] sm:$0xff]
        %v458 = vld [vmem:[%s236 + $0x4e8] sm:$0xff]
        %v459 = vld [vmem:[%s236 + $0x4f0] sm:$0xff]
        %v460 = vld [vmem:[%s236 + $0x4f8] sm:$0xff]
        %v461 = vld [vmem:[%s236 + $0x500] sm:$0xff]
        %v462 = vld [vmem:[%s236 + $0x508] sm:$0xff]
        %v463 = vld [vmem:[%s236 + $0x510] sm:$0xff]
        %v464 = vld [vmem:[%s236 + $0x518] sm:$0xff]
        %v465 = vld [vmem:[%s236 + $0x520] sm:$0xff]
        %v466 = vld [vmem:[%s236 + $0x528] sm:$0xff]
        %v467 = vld [vmem:[%s236 + $0x530] sm:$0xff]
        %v468 = vld [vmem:[%s236 + $0x538] sm:$0xff]
        %v469 = vld [vmem:[%s236 + $0x540] sm:$0xff]
        %v470 = vld [vmem:[%s236 + $0x548] sm:$0xff]
        %v471 = vld [vmem:[%s236 + $0x550] sm:$0xff]
        %v472 = vld [vmem:[%s236 + $0x558] sm:$0xff]
        %v473 = vld [vmem:[%s236 + $0x560] sm:$0xff]
        %v474 = vld [vmem:[%s236 + $0x568] sm:$0xff]
        %v475 = vld [vmem:[%s236 + $0x570] sm:$0xff]
        %v476 = vld [vmem:[%s236 + $0x578] sm:$0xff]
        %v477 = vld [vmem:[%s236 + $0x580] sm:$0xff]
        %v478 = vld [vmem:[%s236 + $0x588] sm:$0xff]
        %v479 = vld [vmem:[%s236 + $0x590] sm:$0xff]
        %v480 = vld [vmem:[%s236 + $0x598] sm:$0xff]
        %v481 = vld [vmem:[%s236 + $0x5a0] sm:$0xff]
        %v482 = vld [vmem:[%s236 + $0x5a8] sm:$0xff]
        %v483 = vld [vmem:[%s236 + $0x5b0] sm:$0xff]
        %v484 = vld [vmem:[%s236 + $0x5b8] sm:$0xff]
        %v485 = vld [vmem:[%s236 + $0x5c0] sm:$0xff]
        %v486 = vld [vmem:[%s236 + $0x5c8] sm:$0xff]
        %v487 = vld [vmem:[%s236 + $0x5d0] sm:$0xff]
        %v488 = vld [vmem:[%s236 + $0x5d8] sm:$0xff]
        %v489 = vld [vmem:[%s236 + $0x5e0] sm:$0xff]
        %v490 = vld [vmem:[%s236 + $0x5e8] sm:$0xff]
        %v491 = vld [vmem:[%s236 + $0x5f0] sm:$0xff]
        %v492 = vld [vmem:[%s236 + $0x5f8] sm:$0xff]
        %v493 = vld [vmem:[%s236 + $0x600] sm:$0xff]
        %v494 = vld [vmem:[%s236 + $0x608] sm:$0xff]
        %v495 = vld [vmem:[%s236 + $0x610] sm:$0xff]
        %v496 = vld [vmem:[%s236 + $0x618] sm:$0xff]
        %v497 = vld [vmem:[%s236 + $0x620] sm:$0xff]
        %v498 = vld [vmem:[%s236 + $0x628] sm:$0xff]
        %v499 = vld [vmem:[%s236 + $0x630] sm:$0xff]
        %v500 = vld [vmem:[%s236 + $0x638] sm:$0xff]
        %v501 = vld [vmem:[%s236 + $0x640] sm:$0xff]
        %v502 = vld [vmem:[%s236 + $0x648] sm:$0xff]
        %v503 = vld [vmem:[%s236 + $0x650] sm:$0xff]
        %v504 = vld [vmem:[%s236 + $0x658] sm:$0xff]
        %v505 = vld [vmem:[%s236 + $0x660] sm:$0xff]
        %v506 = vld [vmem:[%s236 + $0x668] sm:$0xff]
        %v507 = vld [vmem:[%s236 + $0x670] sm:$0xff]
        %v508 = vld [vmem:[%s236 + $0x678] sm:$0xff]
        %v509 = vld [vmem:[%s236 + $0x680] sm:$0xff]
        %v510 = vld [vmem:[%s236 + $0x688] sm:$0xff]
        %v511 = vld [vmem:[%s236 + $0x690] sm:$0xff]
        %v512 = vld [vmem:[%s236 + $0x698] sm:$0xff]
        %v513 = vld [vmem:[%s236 + $0x6a0] sm:$0xff]
        %v514 = vld [vmem:[%s236 + $0x6a8] sm:$0xff]
        %v515 = vld [vmem:[%s236 + $0x6b0] sm:$0xff]
        %v516 = vld [vmem:[%s236 + $0x6b8] sm:$0xff]
        %v517 = vld [vmem:[%s236 + $0x6c0] sm:$0xff]
        %v518 = vld [vmem:[%s236 + $0x6c8] sm:$0xff]
        %v519 = vld [vmem:[%s236 + $0x6d0] sm:$0xff]
        %v520 = vld [vmem:[%s236 + $0x6d8] sm:$0xff]
        %v521 = vld [vmem:[%s236 + $0x6e0] sm:$0xff]
        %v522 = vld [vmem:[%s236 + $0x6e8] sm:$0xff]
        %v523 = vld [vmem:[%s236 + $0x6f0] sm:$0xff]
        %v524 = vld [vmem:[%s236 + $0x6f8] sm:$0xff]
        %v525 = vld [vmem:[%s236 + $0x700] sm:$0xff]
        %v526 = vld [vmem:[%s236 + $0x708] sm:$0xff]
        %v527 = vld [vmem:[%s236 + $0x710] sm:$0xff]
        %v528 = vld [vmem:[%s236 + $0x718] sm:$0xff]
        %v529 = vld [vmem:[%s236 + $0x720] sm:$0xff]
        %v530 = vld [vmem:[%s236 + $0x728] sm:$0xff]
        %v531 = vld [vmem:[%s236 + $0x730] sm:$0xff]
        %v532 = vld [vmem:[%s236 + $0x738] sm:$0xff]
        %v533 = vld [vmem:[%s236 + $0x740] sm:$0xff]
        %v534 = vld [vmem:[%s236 + $0x748] sm:$0xff]
        %v535 = vld [vmem:[%s236 + $0x750] sm:$0xff]
        %v536 = vld [vmem:[%s236 + $0x758] sm:$0xff]
        %v537 = vld [vmem:[%s236 + $0x760] sm:$0xff]
        %v538 = vld [vmem:[%s236 + $0x768] sm:$0xff]
        %v539 = vld [vmem:[%s236 + $0x770] sm:$0xff]
        %v540 = vld [vmem:[%s236 + $0x778] sm:$0xff]
        %v541 = vld [vmem:[%s236 + $0x780] sm:$0xff]
        %v542 = vld [vmem:[%s236 + $0x788] sm:$0xff]
        %v543 = vld [vmem:[%s236 + $0x790] sm:$0xff]
        %v544 = vld [vmem:[%s236 + $0x798] sm:$0xff]
        %v545 = vld [vmem:[%s236 + $0x7a0] sm:$0xff]
        %v546 = vld [vmem:[%s236 + $0x7a8] sm:$0xff]
        %v547 = vld [vmem:[%s236 + $0x7b0] sm:$0xff]
        %v548 = vld [vmem:[%s236 + $0x7b8] sm:$0xff]
        %v549 = vld [vmem:[%s236 + $0x7c0] sm:$0xff]
        %v550 = vld [vmem:[%s236 + $0x7c8] sm:$0xff]
        %v551 = vld [vmem:[%s236 + $0x7d0] sm:$0xff]
        %v552 = vld [vmem:[%s236 + $0x7d8] sm:$0xff]
        %v553 = vld [vmem:[%s236 + $0x7e0] sm:$0xff]
        %v554 = vld [vmem:[%s236 + $0x7e8] sm:$0xff]
        %v555 = vld [vmem:[%s236 + $0x7f0] sm:$0xff]
        %v556 = vld [vmem:[%s236 + $0x7f8] sm:$0xff]
        %v557 = vld [vmem:[%s245] sm:$0xf]
        %v559 = vlaneseq
        %v560 = vshrl.u32 %v559, 7
        %v561 = vsub.s32 0, %v560
        %v562 = vrot.slane %v557, %v561
        %v563 = vlaneseq
        %v564 = vshrl.u32 %v563, 7
        %v565 = vsub.s32 1, %v564
        %v566 = vrot.slane %v557, %v565
        %v567 = vlaneseq
        %v568 = vshrl.u32 %v567, 7
        %v569 = vsub.s32 2, %v568
        %v570 = vrot.slane %v557, %v569
        %v571 = vlaneseq
        %v572 = vshrl.u32 %v571, 7
        %v573 = vsub.s32 3, %v572
        %v574 = vrot.slane %v557, %v573
        %v583 = vunpack.c.l.b16 %v297
        %v584 = vunpack.c.h.b16 %v297
        %v585 = vunpack.c.l.b16 %v298
        %v586 = vunpack.c.h.b16 %v298
        %v587 = vunpack.c.l.b16 %v299
        %v588 = vunpack.c.h.b16 %v299
        %v589 = vunpack.c.l.b16 %v300
        %v590 = vunpack.c.h.b16 %v300
        %v591 = vpack.c.b16 %v583, %v583
        %v592 = vpack.c.b16 %v584, %v584
        %v593 = vpack.c.b16 %v585, %v585
        %v594 = vpack.c.b16 %v586, %v586
        %v595 = vpack.c.b16 %v587, %v587
        %v596 = vpack.c.b16 %v588, %v588
        %v597 = vpack.c.b16 %v589, %v589
        %v598 = vpack.c.b16 %v590, %v590
        %v863 = vunpack.c.l.b16 %v301
        %v864 = vunpack.c.h.b16 %v301
        %v865 = vunpack.c.l.b16 %v302
        %v866 = vunpack.c.h.b16 %v302
        %v867 = vunpack.c.l.b16 %v303
        %v868 = vunpack.c.h.b16 %v303
        %v869 = vunpack.c.l.b16 %v304
        %v870 = vunpack.c.h.b16 %v304
        %v871 = vunpack.c.l.b16 %v305
        %v872 = vunpack.c.h.b16 %v305
        %v873 = vunpack.c.l.b16 %v306
        %v874 = vunpack.c.h.b16 %v306
        %v875 = vunpack.c.l.b16 %v307
        %v876 = vunpack.c.h.b16 %v307
        %v877 = vunpack.c.l.b16 %v308
        %v878 = vunpack.c.h.b16 %v308
        %v879 = vunpack.c.l.b16 %v309
        %v880 = vunpack.c.h.b16 %v309
        %v881 = vunpack.c.l.b16 %v310
        %v882 = vunpack.c.h.b16 %v310
        %v883 = vunpack.c.l.b16 %v311
        %v884 = vunpack.c.h.b16 %v311
        %v885 = vunpack.c.l.b16 %v312
        %v886 = vunpack.c.h.b16 %v312
        %v887 = vunpack.c.l.b16 %v313
        %v888 = vunpack.c.h.b16 %v313
        %v889 = vunpack.c.l.b16 %v314
        %v890 = vunpack.c.h.b16 %v314
        %v891 = vunpack.c.l.b16 %v315
        %v892 = vunpack.c.h.b16 %v315
        %v893 = vunpack.c.l.b16 %v316
        %v894 = vunpack.c.h.b16 %v316
        %v895 = vunpack.c.l.b16 %v317
        %v896 = vunpack.c.h.b16 %v317
        %v897 = vunpack.c.l.b16 %v318
        %v898 = vunpack.c.h.b16 %v318
        %v899 = vunpack.c.l.b16 %v319
        %v900 = vunpack.c.h.b16 %v319
        %v901 = vunpack.c.l.b16 %v320
        %v902 = vunpack.c.h.b16 %v320
        %v903 = vunpack.c.l.b16 %v321
        %v904 = vunpack.c.h.b16 %v321
        %v905 = vunpack.c.l.b16 %v322
        %v906 = vunpack.c.h.b16 %v322
        %v907 = vunpack.c.l.b16 %v323
        %v908 = vunpack.c.h.b16 %v323
        %v909 = vunpack.c.l.b16 %v324
        %v910 = vunpack.c.h.b16 %v324
        %v911 = vunpack.c.l.b16 %v325
        %v912 = vunpack.c.h.b16 %v325
        %v913 = vunpack.c.l.b16 %v326
        %v914 = vunpack.c.h.b16 %v326
        %v915 = vunpack.c.l.b16 %v327
        %v916 = vunpack.c.h.b16 %v327
        %v917 = vunpack.c.l.b16 %v328
        %v918 = vunpack.c.h.b16 %v328
        %v919 = vunpack.c.l.b16 %v329
        %v920 = vunpack.c.h.b16 %v329
        %v921 = vunpack.c.l.b16 %v330
        %v922 = vunpack.c.h.b16 %v330
        %v923 = vunpack.c.l.b16 %v331
        %v924 = vunpack.c.h.b16 %v331
        %v925 = vunpack.c.l.b16 %v332
        %v926 = vunpack.c.h.b16 %v332
        %v927 = vunpack.c.l.b16 %v333
        %v928 = vunpack.c.h.b16 %v333
        %v929 = vunpack.c.l.b16 %v334
        %v930 = vunpack.c.h.b16 %v334
        %v931 = vunpack.c.l.b16 %v335
        %v932 = vunpack.c.h.b16 %v335
        %v933 = vunpack.c.l.b16 %v336
        %v934 = vunpack.c.h.b16 %v336
        %v935 = vunpack.c.l.b16 %v337
        %v936 = vunpack.c.h.b16 %v337
        %v937 = vunpack.c.l.b16 %v338
        %v938 = vunpack.c.h.b16 %v338
        %v939 = vunpack.c.l.b16 %v339
        %v940 = vunpack.c.h.b16 %v339
        %v941 = vunpack.c.l.b16 %v340
        %v942 = vunpack.c.h.b16 %v340
        %v943 = vunpack.c.l.b16 %v341
        %v944 = vunpack.c.h.b16 %v341
        %v945 = vunpack.c.l.b16 %v342
        %v946 = vunpack.c.h.b16 %v342
        %v947 = vunpack.c.l.b16 %v343
        %v948 = vunpack.c.h.b16 %v343
        %v949 = vunpack.c.l.b16 %v344
        %v950 = vunpack.c.h.b16 %v344
        %v951 = vunpack.c.l.b16 %v345
        %v952 = vunpack.c.h.b16 %v345
        %v953 = vunpack.c.l.b16 %v346
        %v954 = vunpack.c.h.b16 %v346
        %v955 = vunpack.c.l.b16 %v347
        %v956 = vunpack.c.h.b16 %v347
        %v957 = vunpack.c.l.b16 %v348
        %v958 = vunpack.c.h.b16 %v348
        %v959 = vunpack.c.l.b16 %v349
        %v960 = vunpack.c.h.b16 %v349
        %v961 = vunpack.c.l.b16 %v350
        %v962 = vunpack.c.h.b16 %v350
        %v963 = vunpack.c.l.b16 %v351
        %v964 = vunpack.c.h.b16 %v351
        %v965 = vunpack.c.l.b16 %v352
        %v966 = vunpack.c.h.b16 %v352
        %v967 = vunpack.c.l.b16 %v353
        %v968 = vunpack.c.h.b16 %v353
        %v969 = vunpack.c.l.b16 %v354
        %v970 = vunpack.c.h.b16 %v354
        %v971 = vunpack.c.l.b16 %v355
        %v972 = vunpack.c.h.b16 %v355
        %v973 = vunpack.c.l.b16 %v356
        %v974 = vunpack.c.h.b16 %v356
        %v975 = vunpack.c.l.b16 %v357
        %v976 = vunpack.c.h.b16 %v357
        %v977 = vunpack.c.l.b16 %v358
        %v978 = vunpack.c.h.b16 %v358
        %v979 = vunpack.c.l.b16 %v359
        %v980 = vunpack.c.h.b16 %v359
        %v981 = vunpack.c.l.b16 %v360
        %v982 = vunpack.c.h.b16 %v360
        %v983 = vunpack.c.l.b16 %v361
        %v984 = vunpack.c.h.b16 %v361
        %v985 = vunpack.c.l.b16 %v362
        %v986 = vunpack.c.h.b16 %v362
        %v987 = vunpack.c.l.b16 %v363
        %v988 = vunpack.c.h.b16 %v363
        %v989 = vunpack.c.l.b16 %v364
        %v990 = vunpack.c.h.b16 %v364
        %v991 = vunpack.c.l.b16 %v365
        %v992 = vunpack.c.h.b16 %v365
        %v993 = vunpack.c.l.b16 %v366
        %v994 = vunpack.c.h.b16 %v366
        %v995 = vunpack.c.l.b16 %v367
        %v996 = vunpack.c.h.b16 %v367
        %v997 = vunpack.c.l.b16 %v368
        %v998 = vunpack.c.h.b16 %v368
        %v999 = vunpack.c.l.b16 %v369
        %v1000 = vunpack.c.h.b16 %v369
        %v1001 = vunpack.c.l.b16 %v370
        %v1002 = vunpack.c.h.b16 %v370
        %v1003 = vunpack.c.l.b16 %v371
        %v1004 = vunpack.c.h.b16 %v371
        %v1005 = vunpack.c.l.b16 %v372
        %v1006 = vunpack.c.h.b16 %v372
        %v1007 = vunpack.c.l.b16 %v373
        %v1008 = vunpack.c.h.b16 %v373
        %v1009 = vunpack.c.l.b16 %v374
        %v1010 = vunpack.c.h.b16 %v374
        %v1011 = vunpack.c.l.b16 %v375
        %v1012 = vunpack.c.h.b16 %v375
        %v1013 = vunpack.c.l.b16 %v376
        %v1014 = vunpack.c.h.b16 %v376
        %v1015 = vunpack.c.l.b16 %v377
        %v1016 = vunpack.c.h.b16 %v377
        %v1017 = vunpack.c.l.b16 %v378
        %v1018 = vunpack.c.h.b16 %v378
        %v1019 = vunpack.c.l.b16 %v379
        %v1020 = vunpack.c.h.b16 %v379
        %v1021 = vunpack.c.l.b16 %v380
        %v1022 = vunpack.c.h.b16 %v380
        %v1023 = vunpack.c.l.b16 %v381
        %v1024 = vunpack.c.h.b16 %v381
        %v1025 = vunpack.c.l.b16 %v382
        %v1026 = vunpack.c.h.b16 %v382
        %v1027 = vunpack.c.l.b16 %v383
        %v1028 = vunpack.c.h.b16 %v383
        %v1029 = vunpack.c.l.b16 %v384
        %v1030 = vunpack.c.h.b16 %v384
        %v1031 = vunpack.c.l.b16 %v385
        %v1032 = vunpack.c.h.b16 %v385
        %v1033 = vunpack.c.l.b16 %v386
        %v1034 = vunpack.c.h.b16 %v386
        %v1035 = vunpack.c.l.b16 %v387
        %v1036 = vunpack.c.h.b16 %v387
        %v1037 = vunpack.c.l.b16 %v388
        %v1038 = vunpack.c.h.b16 %v388
        %v1039 = vunpack.c.l.b16 %v389
        %v1040 = vunpack.c.h.b16 %v389
        %v1041 = vunpack.c.l.b16 %v390
        %v1042 = vunpack.c.h.b16 %v390
        %v1043 = vunpack.c.l.b16 %v391
        %v1044 = vunpack.c.h.b16 %v391
        %v1045 = vunpack.c.l.b16 %v392
        %v1046 = vunpack.c.h.b16 %v392
        %v1047 = vunpack.c.l.b16 %v393
        %v1048 = vunpack.c.h.b16 %v393
        %v1049 = vunpack.c.l.b16 %v394
        %v1050 = vunpack.c.h.b16 %v394
        %v1051 = vunpack.c.l.b16 %v395
        %v1052 = vunpack.c.h.b16 %v395
        %v1053 = vunpack.c.l.b16 %v396
        %v1054 = vunpack.c.h.b16 %v396
        %v1055 = vunpack.c.l.b16 %v397
        %v1056 = vunpack.c.h.b16 %v397
        %v1057 = vunpack.c.l.b16 %v398
        %v1058 = vunpack.c.h.b16 %v398
        %v1059 = vunpack.c.l.b16 %v399
        %v1060 = vunpack.c.h.b16 %v399
        %v1061 = vunpack.c.l.b16 %v400
        %v1062 = vunpack.c.h.b16 %v400
        %v1063 = vunpack.c.l.b16 %v401
        %v1064 = vunpack.c.h.b16 %v401
        %v1065 = vunpack.c.l.b16 %v402
        %v1066 = vunpack.c.h.b16 %v402
        %v1067 = vunpack.c.l.b16 %v403
        %v1068 = vunpack.c.h.b16 %v403
        %v1069 = vunpack.c.l.b16 %v404
        %v1070 = vunpack.c.h.b16 %v404
        %v1071 = vunpack.c.l.b16 %v405
        %v1072 = vunpack.c.h.b16 %v405
        %v1073 = vunpack.c.l.b16 %v406
        %v1074 = vunpack.c.h.b16 %v406
        %v1075 = vunpack.c.l.b16 %v407
        %v1076 = vunpack.c.h.b16 %v407
        %v1077 = vunpack.c.l.b16 %v408
        %v1078 = vunpack.c.h.b16 %v408
        %v1079 = vunpack.c.l.b16 %v409
        %v1080 = vunpack.c.h.b16 %v409
        %v1081 = vunpack.c.l.b16 %v410
        %v1082 = vunpack.c.h.b16 %v410
        %v1083 = vunpack.c.l.b16 %v411
        %v1084 = vunpack.c.h.b16 %v411
        %v1085 = vunpack.c.l.b16 %v412
        %v1086 = vunpack.c.h.b16 %v412
        %v1087 = vunpack.c.l.b16 %v413
        %v1088 = vunpack.c.h.b16 %v413
        %v1089 = vunpack.c.l.b16 %v414
        %v1090 = vunpack.c.h.b16 %v414
        %v1091 = vunpack.c.l.b16 %v415
        %v1092 = vunpack.c.h.b16 %v415
        %v1093 = vunpack.c.l.b16 %v416
        %v1094 = vunpack.c.h.b16 %v416
        %v1095 = vunpack.c.l.b16 %v417
        %v1096 = vunpack.c.h.b16 %v417
        %v1097 = vunpack.c.l.b16 %v418
        %v1098 = vunpack.c.h.b16 %v418
        %v1099 = vunpack.c.l.b16 %v419
        %v1100 = vunpack.c.h.b16 %v419
        %v1101 = vunpack.c.l.b16 %v420
        %v1102 = vunpack.c.h.b16 %v420
        %v1103 = vunpack.c.l.b16 %v421
        %v1104 = vunpack.c.h.b16 %v421
        %v1105 = vunpack.c.l.b16 %v422
        %v1106 = vunpack.c.h.b16 %v422
        %v1107 = vunpack.c.l.b16 %v423
        %v1108 = vunpack.c.h.b16 %v423
        %v1109 = vunpack.c.l.b16 %v424
        %v1110 = vunpack.c.h.b16 %v424
        %v1111 = vunpack.c.l.b16 %v425
        %v1112 = vunpack.c.h.b16 %v425
        %v1113 = vunpack.c.l.b16 %v426
        %v1114 = vunpack.c.h.b16 %v426
        %v1115 = vunpack.c.l.b16 %v427
        %v1116 = vunpack.c.h.b16 %v427
        %v1117 = vunpack.c.l.b16 %v428
        %v1118 = vunpack.c.h.b16 %v428
        %v1119 = vunpack.c.l.b16 %v429
        %v1120 = vunpack.c.h.b16 %v429
        %v1121 = vunpack.c.l.b16 %v430
        %v1122 = vunpack.c.h.b16 %v430
        %v1123 = vunpack.c.l.b16 %v431
        %v1124 = vunpack.c.h.b16 %v431
        %v1125 = vunpack.c.l.b16 %v432
        %v1126 = vunpack.c.h.b16 %v432
        %v1127 = vunpack.c.l.b16 %v433
        %v1128 = vunpack.c.h.b16 %v433
        %v1129 = vunpack.c.l.b16 %v434
        %v1130 = vunpack.c.h.b16 %v434
        %v1131 = vunpack.c.l.b16 %v435
        %v1132 = vunpack.c.h.b16 %v435
        %v1133 = vunpack.c.l.b16 %v436
        %v1134 = vunpack.c.h.b16 %v436
        %v1135 = vunpack.c.l.b16 %v437
        %v1136 = vunpack.c.h.b16 %v437
        %v1137 = vunpack.c.l.b16 %v438
        %v1138 = vunpack.c.h.b16 %v438
        %v1139 = vunpack.c.l.b16 %v439
        %v1140 = vunpack.c.h.b16 %v439
        %v1141 = vunpack.c.l.b16 %v440
        %v1142 = vunpack.c.h.b16 %v440
        %v1143 = vunpack.c.l.b16 %v441
        %v1144 = vunpack.c.h.b16 %v441
        %v1145 = vunpack.c.l.b16 %v442
        %v1146 = vunpack.c.h.b16 %v442
        %v1147 = vunpack.c.l.b16 %v443
        %v1148 = vunpack.c.h.b16 %v443
        %v1149 = vunpack.c.l.b16 %v444
        %v1150 = vunpack.c.h.b16 %v444
        %v1151 = vunpack.c.l.b16 %v445
        %v1152 = vunpack.c.h.b16 %v445
        %v1153 = vunpack.c.l.b16 %v446
        %v1154 = vunpack.c.h.b16 %v446
        %v1155 = vunpack.c.l.b16 %v447
        %v1156 = vunpack.c.h.b16 %v447
        %v1157 = vunpack.c.l.b16 %v448
        %v1158 = vunpack.c.h.b16 %v448
        %v1159 = vunpack.c.l.b16 %v449
        %v1160 = vunpack.c.h.b16 %v449
        %v1161 = vunpack.c.l.b16 %v450
        %v1162 = vunpack.c.h.b16 %v450
        %v1163 = vunpack.c.l.b16 %v451
        %v1164 = vunpack.c.h.b16 %v451
        %v1165 = vunpack.c.l.b16 %v452
        %v1166 = vunpack.c.h.b16 %v452
        %v1167 = vunpack.c.l.b16 %v453
        %v1168 = vunpack.c.h.b16 %v453
        %v1169 = vunpack.c.l.b16 %v454
        %v1170 = vunpack.c.h.b16 %v454
        %v1171 = vunpack.c.l.b16 %v455
        %v1172 = vunpack.c.h.b16 %v455
        %v1173 = vunpack.c.l.b16 %v456
        %v1174 = vunpack.c.h.b16 %v456
        %v1175 = vunpack.c.l.b16 %v457
        %v1176 = vunpack.c.h.b16 %v457
        %v1177 = vunpack.c.l.b16 %v458
        %v1178 = vunpack.c.h.b16 %v458
        %v1179 = vunpack.c.l.b16 %v459
        %v1180 = vunpack.c.h.b16 %v459
        %v1181 = vunpack.c.l.b16 %v460
        %v1182 = vunpack.c.h.b16 %v460
        %v1183 = vunpack.c.l.b16 %v461
        %v1184 = vunpack.c.h.b16 %v461
        %v1185 = vunpack.c.l.b16 %v462
        %v1186 = vunpack.c.h.b16 %v462
        %v1187 = vunpack.c.l.b16 %v463
        %v1188 = vunpack.c.h.b16 %v463
        %v1189 = vunpack.c.l.b16 %v464
        %v1190 = vunpack.c.h.b16 %v464
        %v1191 = vunpack.c.l.b16 %v465
        %v1192 = vunpack.c.h.b16 %v465
        %v1193 = vunpack.c.l.b16 %v466
        %v1194 = vunpack.c.h.b16 %v466
        %v1195 = vunpack.c.l.b16 %v467
        %v1196 = vunpack.c.h.b16 %v467
        %v1197 = vunpack.c.l.b16 %v468
        %v1198 = vunpack.c.h.b16 %v468
        %v1199 = vunpack.c.l.b16 %v469
        %v1200 = vunpack.c.h.b16 %v469
        %v1201 = vunpack.c.l.b16 %v470
        %v1202 = vunpack.c.h.b16 %v470
        %v1203 = vunpack.c.l.b16 %v471
        %v1204 = vunpack.c.h.b16 %v471
        %v1205 = vunpack.c.l.b16 %v472
        %v1206 = vunpack.c.h.b16 %v472
        %v1207 = vunpack.c.l.b16 %v473
        %v1208 = vunpack.c.h.b16 %v473
        %v1209 = vunpack.c.l.b16 %v474
        %v1210 = vunpack.c.h.b16 %v474
        %v1211 = vunpack.c.l.b16 %v475
        %v1212 = vunpack.c.h.b16 %v475
        %v1213 = vunpack.c.l.b16 %v476
        %v1214 = vunpack.c.h.b16 %v476
        %v1215 = vunpack.c.l.b16 %v477
        %v1216 = vunpack.c.h.b16 %v477
        %v1217 = vunpack.c.l.b16 %v478
        %v1218 = vunpack.c.h.b16 %v478
        %v1219 = vunpack.c.l.b16 %v479
        %v1220 = vunpack.c.h.b16 %v479
        %v1221 = vunpack.c.l.b16 %v480
        %v1222 = vunpack.c.h.b16 %v480
        %v1223 = vunpack.c.l.b16 %v481
        %v1224 = vunpack.c.h.b16 %v481
        %v1225 = vunpack.c.l.b16 %v482
        %v1226 = vunpack.c.h.b16 %v482
        %v1227 = vunpack.c.l.b16 %v483
        %v1228 = vunpack.c.h.b16 %v483
        %v1229 = vunpack.c.l.b16 %v484
        %v1230 = vunpack.c.h.b16 %v484
        %v1231 = vunpack.c.l.b16 %v485
        %v1232 = vunpack.c.h.b16 %v485
        %v1233 = vunpack.c.l.b16 %v486
        %v1234 = vunpack.c.h.b16 %v486
        %v1235 = vunpack.c.l.b16 %v487
        %v1236 = vunpack.c.h.b16 %v487
        %v1237 = vunpack.c.l.b16 %v488
        %v1238 = vunpack.c.h.b16 %v488
        %v1239 = vunpack.c.l.b16 %v489
        %v1240 = vunpack.c.h.b16 %v489
        %v1241 = vunpack.c.l.b16 %v490
        %v1242 = vunpack.c.h.b16 %v490
        %v1243 = vunpack.c.l.b16 %v491
        %v1244 = vunpack.c.h.b16 %v491
        %v1245 = vunpack.c.l.b16 %v492
        %v1246 = vunpack.c.h.b16 %v492
        %v1247 = vunpack.c.l.b16 %v493
        %v1248 = vunpack.c.h.b16 %v493
        %v1249 = vunpack.c.l.b16 %v494
        %v1250 = vunpack.c.h.b16 %v494
        %v1251 = vunpack.c.l.b16 %v495
        %v1252 = vunpack.c.h.b16 %v495
        %v1253 = vunpack.c.l.b16 %v496
        %v1254 = vunpack.c.h.b16 %v496
        %v1255 = vunpack.c.l.b16 %v497
        %v1256 = vunpack.c.h.b16 %v497
        %v1257 = vunpack.c.l.b16 %v498
        %v1258 = vunpack.c.h.b16 %v498
        %v1259 = vunpack.c.l.b16 %v499
        %v1260 = vunpack.c.h.b16 %v499
        %v1261 = vunpack.c.l.b16 %v500
        %v1262 = vunpack.c.h.b16 %v500
        %v1263 = vunpack.c.l.b16 %v501
        %v1264 = vunpack.c.h.b16 %v501
        %v1265 = vunpack.c.l.b16 %v502
        %v1266 = vunpack.c.h.b16 %v502
        %v1267 = vunpack.c.l.b16 %v503
        %v1268 = vunpack.c.h.b16 %v503
        %v1269 = vunpack.c.l.b16 %v504
        %v1270 = vunpack.c.h.b16 %v504
        %v1271 = vunpack.c.l.b16 %v505
        %v1272 = vunpack.c.h.b16 %v505
        %v1273 = vunpack.c.l.b16 %v506
        %v1274 = vunpack.c.h.b16 %v506
        %v1275 = vunpack.c.l.b16 %v507
        %v1276 = vunpack.c.h.b16 %v507
        %v1277 = vunpack.c.l.b16 %v508
        %v1278 = vunpack.c.h.b16 %v508
        %v1279 = vunpack.c.l.b16 %v509
        %v1280 = vunpack.c.h.b16 %v509
        %v1281 = vunpack.c.l.b16 %v510
        %v1282 = vunpack.c.h.b16 %v510
        %v1283 = vunpack.c.l.b16 %v511
        %v1284 = vunpack.c.h.b16 %v511
        %v1285 = vunpack.c.l.b16 %v512
        %v1286 = vunpack.c.h.b16 %v512
        %v1287 = vunpack.c.l.b16 %v513
        %v1288 = vunpack.c.h.b16 %v513
        %v1289 = vunpack.c.l.b16 %v514
        %v1290 = vunpack.c.h.b16 %v514
        %v1291 = vunpack.c.l.b16 %v515
        %v1292 = vunpack.c.h.b16 %v515
        %v1293 = vunpack.c.l.b16 %v516
        %v1294 = vunpack.c.h.b16 %v516
        %v1295 = vunpack.c.l.b16 %v517
        %v1296 = vunpack.c.h.b16 %v517
        %v1297 = vunpack.c.l.b16 %v518
        %v1298 = vunpack.c.h.b16 %v518
        %v1299 = vunpack.c.l.b16 %v519
        %v1300 = vunpack.c.h.b16 %v519
        %v1301 = vunpack.c.l.b16 %v520
        %v1302 = vunpack.c.h.b16 %v520
        %v1303 = vunpack.c.l.b16 %v521
        %v1304 = vunpack.c.h.b16 %v521
        %v1305 = vunpack.c.l.b16 %v522
        %v1306 = vunpack.c.h.b16 %v522
        %v1307 = vunpack.c.l.b16 %v523
        %v1308 = vunpack.c.h.b16 %v523
        %v1309 = vunpack.c.l.b16 %v524
        %v1310 = vunpack.c.h.b16 %v524
        %v1311 = vunpack.c.l.b16 %v525
        %v1312 = vunpack.c.h.b16 %v525
        %v1313 = vunpack.c.l.b16 %v526
        %v1314 = vunpack.c.h.b16 %v526
        %v1315 = vunpack.c.l.b16 %v527
        %v1316 = vunpack.c.h.b16 %v527
        %v1317 = vunpack.c.l.b16 %v528
        %v1318 = vunpack.c.h.b16 %v528
        %v1319 = vunpack.c.l.b16 %v529
        %v1320 = vunpack.c.h.b16 %v529
        %v1321 = vunpack.c.l.b16 %v530
        %v1322 = vunpack.c.h.b16 %v530
        %v1323 = vunpack.c.l.b16 %v531
        %v1324 = vunpack.c.h.b16 %v531
        %v1325 = vunpack.c.l.b16 %v532
        %v1326 = vunpack.c.h.b16 %v532
        %v1327 = vunpack.c.l.b16 %v533
        %v1328 = vunpack.c.h.b16 %v533
        %v1329 = vunpack.c.l.b16 %v534
        %v1330 = vunpack.c.h.b16 %v534
        %v1331 = vunpack.c.l.b16 %v535
        %v1332 = vunpack.c.h.b16 %v535
        %v1333 = vunpack.c.l.b16 %v536
        %v1334 = vunpack.c.h.b16 %v536
        %v1335 = vunpack.c.l.b16 %v537
        %v1336 = vunpack.c.h.b16 %v537
        %v1337 = vunpack.c.l.b16 %v538
        %v1338 = vunpack.c.h.b16 %v538
        %v1339 = vunpack.c.l.b16 %v539
        %v1340 = vunpack.c.h.b16 %v539
        %v1341 = vunpack.c.l.b16 %v540
        %v1342 = vunpack.c.h.b16 %v540
        %v1343 = vunpack.c.l.b16 %v541
        %v1344 = vunpack.c.h.b16 %v541
        %v1345 = vunpack.c.l.b16 %v542
        %v1346 = vunpack.c.h.b16 %v542
        %v1347 = vunpack.c.l.b16 %v543
        %v1348 = vunpack.c.h.b16 %v543
        %v1349 = vunpack.c.l.b16 %v544
        %v1350 = vunpack.c.h.b16 %v544
        %v1351 = vunpack.c.l.b16 %v545
        %v1352 = vunpack.c.h.b16 %v545
        %v1353 = vunpack.c.l.b16 %v546
        %v1354 = vunpack.c.h.b16 %v546
        %v1355 = vunpack.c.l.b16 %v547
        %v1356 = vunpack.c.h.b16 %v547
        %v1357 = vunpack.c.l.b16 %v548
        %v1358 = vunpack.c.h.b16 %v548
        %v1359 = vunpack.c.l.b16 %v549
        %v1360 = vunpack.c.h.b16 %v549
        %v1361 = vunpack.c.l.b16 %v550
        %v1362 = vunpack.c.h.b16 %v550
        %v1363 = vunpack.c.l.b16 %v551
        %v1364 = vunpack.c.h.b16 %v551
        %v1365 = vunpack.c.l.b16 %v552
        %v1366 = vunpack.c.h.b16 %v552
        %v1367 = vunpack.c.l.b16 %v553
        %v1368 = vunpack.c.h.b16 %v553
        %v1369 = vunpack.c.l.b16 %v554
        %v1370 = vunpack.c.h.b16 %v554
        %v1371 = vunpack.c.l.b16 %v555
        %v1372 = vunpack.c.h.b16 %v555
        %v1373 = vunpack.c.l.b16 %v556
        %v1374 = vunpack.c.h.b16 %v556
        %v1375 = vpack.c.b16 %v867, %v863
        %v1376 = vpack.c.b16 %v868, %v864
        %v1377 = vpack.c.b16 %v869, %v865
        %v1378 = vpack.c.b16 %v870, %v866
        %v1379 = vpack.c.b16 %v875, %v871
        %v1380 = vpack.c.b16 %v876, %v872
        %v1381 = vpack.c.b16 %v877, %v873
        %v1382 = vpack.c.b16 %v878, %v874
        %v1383 = vpack.c.b16 %v883, %v879
        %v1384 = vpack.c.b16 %v884, %v880
        %v1385 = vpack.c.b16 %v885, %v881
        %v1386 = vpack.c.b16 %v886, %v882
        %v1387 = vpack.c.b16 %v891, %v887
        %v1388 = vpack.c.b16 %v892, %v888
        %v1389 = vpack.c.b16 %v893, %v889
        %v1390 = vpack.c.b16 %v894, %v890
        %v1391 = vpack.c.b16 %v899, %v895
        %v1392 = vpack.c.b16 %v900, %v896
        %v1393 = vpack.c.b16 %v901, %v897
        %v1394 = vpack.c.b16 %v902, %v898
        %v1395 = vpack.c.b16 %v907, %v903
        %v1396 = vpack.c.b16 %v908, %v904
        %v1397 = vpack.c.b16 %v909, %v905
        %v1398 = vpack.c.b16 %v910, %v906
        %v1399 = vpack.c.b16 %v915, %v911
        %v1400 = vpack.c.b16 %v916, %v912
        %v1401 = vpack.c.b16 %v917, %v913
        %v1402 = vpack.c.b16 %v918, %v914
        %v1403 = vpack.c.b16 %v923, %v919
        %v1404 = vpack.c.b16 %v924, %v920
        %v1405 = vpack.c.b16 %v925, %v921
        %v1406 = vpack.c.b16 %v926, %v922
        %v1407 = vpack.c.b16 %v931, %v927
        %v1408 = vpack.c.b16 %v932, %v928
        %v1409 = vpack.c.b16 %v933, %v929
        %v1410 = vpack.c.b16 %v934, %v930
        %v1411 = vpack.c.b16 %v939, %v935
        %v1412 = vpack.c.b16 %v940, %v936
        %v1413 = vpack.c.b16 %v941, %v937
        %v1414 = vpack.c.b16 %v942, %v938
        %v1415 = vpack.c.b16 %v947, %v943
        %v1416 = vpack.c.b16 %v948, %v944
        %v1417 = vpack.c.b16 %v949, %v945
        %v1418 = vpack.c.b16 %v950, %v946
        %v1419 = vpack.c.b16 %v955, %v951
        %v1420 = vpack.c.b16 %v956, %v952
        %v1421 = vpack.c.b16 %v957, %v953
        %v1422 = vpack.c.b16 %v958, %v954
        %v1423 = vpack.c.b16 %v963, %v959
        %v1424 = vpack.c.b16 %v964, %v960
        %v1425 = vpack.c.b16 %v965, %v961
        %v1426 = vpack.c.b16 %v966, %v962
        %v1427 = vpack.c.b16 %v971, %v967
        %v1428 = vpack.c.b16 %v972, %v968
        %v1429 = vpack.c.b16 %v973, %v969
        %v1430 = vpack.c.b16 %v974, %v970
        %v1431 = vpack.c.b16 %v979, %v975
        %v1432 = vpack.c.b16 %v980, %v976
        %v1433 = vpack.c.b16 %v981, %v977
        %v1434 = vpack.c.b16 %v982, %v978
        %v1435 = vpack.c.b16 %v987, %v983
        %v1436 = vpack.c.b16 %v988, %v984
        %v1437 = vpack.c.b16 %v989, %v985
        %v1438 = vpack.c.b16 %v990, %v986
        %v1439 = vpack.c.b16 %v995, %v991
        %v1440 = vpack.c.b16 %v996, %v992
        %v1441 = vpack.c.b16 %v997, %v993
        %v1442 = vpack.c.b16 %v998, %v994
        %v1443 = vpack.c.b16 %v1003, %v999
        %v1444 = vpack.c.b16 %v1004, %v1000
        %v1445 = vpack.c.b16 %v1005, %v1001
        %v1446 = vpack.c.b16 %v1006, %v1002
        %v1447 = vpack.c.b16 %v1011, %v1007
        %v1448 = vpack.c.b16 %v1012, %v1008
        %v1449 = vpack.c.b16 %v1013, %v1009
        %v1450 = vpack.c.b16 %v1014, %v1010
        %v1451 = vpack.c.b16 %v1019, %v1015
        %v1452 = vpack.c.b16 %v1020, %v1016
        %v1453 = vpack.c.b16 %v1021, %v1017
        %v1454 = vpack.c.b16 %v1022, %v1018
        %v1455 = vpack.c.b16 %v1027, %v1023
        %v1456 = vpack.c.b16 %v1028, %v1024
        %v1457 = vpack.c.b16 %v1029, %v1025
        %v1458 = vpack.c.b16 %v1030, %v1026
        %v1459 = vpack.c.b16 %v1035, %v1031
        %v1460 = vpack.c.b16 %v1036, %v1032
        %v1461 = vpack.c.b16 %v1037, %v1033
        %v1462 = vpack.c.b16 %v1038, %v1034
        %v1463 = vpack.c.b16 %v1043, %v1039
        %v1464 = vpack.c.b16 %v1044, %v1040
        %v1465 = vpack.c.b16 %v1045, %v1041
        %v1466 = vpack.c.b16 %v1046, %v1042
        %v1467 = vpack.c.b16 %v1051, %v1047
        %v1468 = vpack.c.b16 %v1052, %v1048
        %v1469 = vpack.c.b16 %v1053, %v1049
        %v1470 = vpack.c.b16 %v1054, %v1050
        %v1471 = vpack.c.b16 %v1059, %v1055
        %v1472 = vpack.c.b16 %v1060, %v1056
        %v1473 = vpack.c.b16 %v1061, %v1057
        %v1474 = vpack.c.b16 %v1062, %v1058
        %v1475 = vpack.c.b16 %v1067, %v1063
        %v1476 = vpack.c.b16 %v1068, %v1064
        %v1477 = vpack.c.b16 %v1069, %v1065
        %v1478 = vpack.c.b16 %v1070, %v1066
        %v1479 = vpack.c.b16 %v1075, %v1071
        %v1480 = vpack.c.b16 %v1076, %v1072
        %v1481 = vpack.c.b16 %v1077, %v1073
        %v1482 = vpack.c.b16 %v1078, %v1074
        %v1483 = vpack.c.b16 %v1083, %v1079
        %v1484 = vpack.c.b16 %v1084, %v1080
        %v1485 = vpack.c.b16 %v1085, %v1081
        %v1486 = vpack.c.b16 %v1086, %v1082
        %v1487 = vpack.c.b16 %v1091, %v1087
        %v1488 = vpack.c.b16 %v1092, %v1088
        %v1489 = vpack.c.b16 %v1093, %v1089
        %v1490 = vpack.c.b16 %v1094, %v1090
        %v1491 = vpack.c.b16 %v1099, %v1095
        %v1492 = vpack.c.b16 %v1100, %v1096
        %v1493 = vpack.c.b16 %v1101, %v1097
        %v1494 = vpack.c.b16 %v1102, %v1098
        %v1495 = vpack.c.b16 %v1107, %v1103
        %v1496 = vpack.c.b16 %v1108, %v1104
        %v1497 = vpack.c.b16 %v1109, %v1105
        %v1498 = vpack.c.b16 %v1110, %v1106
        %v1499 = vpack.c.b16 %v1115, %v1111
        %v1500 = vpack.c.b16 %v1116, %v1112
        %v1501 = vpack.c.b16 %v1117, %v1113
        %v1502 = vpack.c.b16 %v1118, %v1114
        %v1503 = vpack.c.b16 %v1123, %v1119
        %v1504 = vpack.c.b16 %v1124, %v1120
        %v1505 = vpack.c.b16 %v1125, %v1121
        %v1506 = vpack.c.b16 %v1126, %v1122
        %v1507 = vpack.c.b16 %v1131, %v1127
        %v1508 = vpack.c.b16 %v1132, %v1128
        %v1509 = vpack.c.b16 %v1133, %v1129
        %v1510 = vpack.c.b16 %v1134, %v1130
        %v1511 = vpack.c.b16 %v1139, %v1135
        %v1512 = vpack.c.b16 %v1140, %v1136
        %v1513 = vpack.c.b16 %v1141, %v1137
        %v1514 = vpack.c.b16 %v1142, %v1138
        %v1515 = vpack.c.b16 %v1147, %v1143
        %v1516 = vpack.c.b16 %v1148, %v1144
        %v1517 = vpack.c.b16 %v1149, %v1145
        %v1518 = vpack.c.b16 %v1150, %v1146
        %v1519 = vpack.c.b16 %v1155, %v1151
        %v1520 = vpack.c.b16 %v1156, %v1152
        %v1521 = vpack.c.b16 %v1157, %v1153
        %v1522 = vpack.c.b16 %v1158, %v1154
        %v1523 = vpack.c.b16 %v1163, %v1159
        %v1524 = vpack.c.b16 %v1164, %v1160
        %v1525 = vpack.c.b16 %v1165, %v1161
        %v1526 = vpack.c.b16 %v1166, %v1162
        %v1527 = vpack.c.b16 %v1171, %v1167
        %v1528 = vpack.c.b16 %v1172, %v1168
        %v1529 = vpack.c.b16 %v1173, %v1169
        %v1530 = vpack.c.b16 %v1174, %v1170
        %v1531 = vpack.c.b16 %v1179, %v1175
        %v1532 = vpack.c.b16 %v1180, %v1176
        %v1533 = vpack.c.b16 %v1181, %v1177
        %v1534 = vpack.c.b16 %v1182, %v1178
        %v1535 = vpack.c.b16 %v1187, %v1183
        %v1536 = vpack.c.b16 %v1188, %v1184
        %v1537 = vpack.c.b16 %v1189, %v1185
        %v1538 = vpack.c.b16 %v1190, %v1186
        %v1539 = vpack.c.b16 %v1195, %v1191
        %v1540 = vpack.c.b16 %v1196, %v1192
        %v1541 = vpack.c.b16 %v1197, %v1193
        %v1542 = vpack.c.b16 %v1198, %v1194
        %v1543 = vpack.c.b16 %v1203, %v1199
        %v1544 = vpack.c.b16 %v1204, %v1200
        %v1545 = vpack.c.b16 %v1205, %v1201
        %v1546 = vpack.c.b16 %v1206, %v1202
        %v1547 = vpack.c.b16 %v1211, %v1207
        %v1548 = vpack.c.b16 %v1212, %v1208
        %v1549 = vpack.c.b16 %v1213, %v1209
        %v1550 = vpack.c.b16 %v1214, %v1210
        %v1551 = vpack.c.b16 %v1219, %v1215
        %v1552 = vpack.c.b16 %v1220, %v1216
        %v1553 = vpack.c.b16 %v1221, %v1217
        %v1554 = vpack.c.b16 %v1222, %v1218
        %v1555 = vpack.c.b16 %v1227, %v1223
        %v1556 = vpack.c.b16 %v1228, %v1224
        %v1557 = vpack.c.b16 %v1229, %v1225
        %v1558 = vpack.c.b16 %v1230, %v1226
        %v1559 = vpack.c.b16 %v1235, %v1231
        %v1560 = vpack.c.b16 %v1236, %v1232
        %v1561 = vpack.c.b16 %v1237, %v1233
        %v1562 = vpack.c.b16 %v1238, %v1234
        %v1563 = vpack.c.b16 %v1243, %v1239
        %v1564 = vpack.c.b16 %v1244, %v1240
        %v1565 = vpack.c.b16 %v1245, %v1241
        %v1566 = vpack.c.b16 %v1246, %v1242
        %v1567 = vpack.c.b16 %v1251, %v1247
        %v1568 = vpack.c.b16 %v1252, %v1248
        %v1569 = vpack.c.b16 %v1253, %v1249
        %v1570 = vpack.c.b16 %v1254, %v1250
        %v1571 = vpack.c.b16 %v1259, %v1255
        %v1572 = vpack.c.b16 %v1260, %v1256
        %v1573 = vpack.c.b16 %v1261, %v1257
        %v1574 = vpack.c.b16 %v1262, %v1258
        %v1575 = vpack.c.b16 %v1267, %v1263
        %v1576 = vpack.c.b16 %v1268, %v1264
        %v1577 = vpack.c.b16 %v1269, %v1265
        %v1578 = vpack.c.b16 %v1270, %v1266
        %v1579 = vpack.c.b16 %v1275, %v1271
        %v1580 = vpack.c.b16 %v1276, %v1272
        %v1581 = vpack.c.b16 %v1277, %v1273
        %v1582 = vpack.c.b16 %v1278, %v1274
        %v1583 = vpack.c.b16 %v1283, %v1279
        %v1584 = vpack.c.b16 %v1284, %v1280
        %v1585 = vpack.c.b16 %v1285, %v1281
        %v1586 = vpack.c.b16 %v1286, %v1282
        %v1587 = vpack.c.b16 %v1291, %v1287
        %v1588 = vpack.c.b16 %v1292, %v1288
        %v1589 = vpack.c.b16 %v1293, %v1289
        %v1590 = vpack.c.b16 %v1294, %v1290
        %v1591 = vpack.c.b16 %v1299, %v1295
        %v1592 = vpack.c.b16 %v1300, %v1296
        %v1593 = vpack.c.b16 %v1301, %v1297
        %v1594 = vpack.c.b16 %v1302, %v1298
        %v1595 = vpack.c.b16 %v1307, %v1303
        %v1596 = vpack.c.b16 %v1308, %v1304
        %v1597 = vpack.c.b16 %v1309, %v1305
        %v1598 = vpack.c.b16 %v1310, %v1306
        %v1599 = vpack.c.b16 %v1315, %v1311
        %v1600 = vpack.c.b16 %v1316, %v1312
        %v1601 = vpack.c.b16 %v1317, %v1313
        %v1602 = vpack.c.b16 %v1318, %v1314
        %v1603 = vpack.c.b16 %v1323, %v1319
        %v1604 = vpack.c.b16 %v1324, %v1320
        %v1605 = vpack.c.b16 %v1325, %v1321
        %v1606 = vpack.c.b16 %v1326, %v1322
        %v1607 = vpack.c.b16 %v1331, %v1327
        %v1608 = vpack.c.b16 %v1332, %v1328
        %v1609 = vpack.c.b16 %v1333, %v1329
        %v1610 = vpack.c.b16 %v1334, %v1330
        %v1611 = vpack.c.b16 %v1339, %v1335
        %v1612 = vpack.c.b16 %v1340, %v1336
        %v1613 = vpack.c.b16 %v1341, %v1337
        %v1614 = vpack.c.b16 %v1342, %v1338
        %v1615 = vpack.c.b16 %v1347, %v1343
        %v1616 = vpack.c.b16 %v1348, %v1344
        %v1617 = vpack.c.b16 %v1349, %v1345
        %v1618 = vpack.c.b16 %v1350, %v1346
        %v1619 = vpack.c.b16 %v1355, %v1351
        %v1620 = vpack.c.b16 %v1356, %v1352
        %v1621 = vpack.c.b16 %v1357, %v1353
        %v1622 = vpack.c.b16 %v1358, %v1354
        %v1623 = vpack.c.b16 %v1363, %v1359
        %v1624 = vpack.c.b16 %v1364, %v1360
        %v1625 = vpack.c.b16 %v1365, %v1361
        %v1626 = vpack.c.b16 %v1366, %v1362
        %v1627 = vpack.c.b16 %v1371, %v1367
        %v1628 = vpack.c.b16 %v1372, %v1368
        %v1629 = vpack.c.b16 %v1373, %v1369
        %v1630 = vpack.c.b16 %v1374, %v1370
        %1887 = vmatprep.subr.bf16.mxu0 %v1404
        %1888 = vmatpush1.bf16.msra.mxu0 %v1403
        %1889 = vmatprep.subr.bf16.mxu0 %v1400
        %1890 = vmatpush1.bf16.msra.mxu0 %v1399
        %1891 = vmatprep.subr.bf16.mxu0 %v1396
        %1892 = vmatpush1.bf16.msra.mxu0 %v1395
        %1893 = vmatprep.subr.bf16.mxu0 %v1392
        %1894 = vmatpush1.bf16.msra.mxu0 %v1391
        %1895 = vmatprep.subr.bf16.mxu0 %v1388
        %1896 = vmatpush1.bf16.msra.mxu0 %v1387
        %1897 = vmatprep.subr.bf16.mxu0 %v1384
        %1898 = vmatpush1.bf16.msra.mxu0 %v1383
        %1899 = vmatprep.subr.bf16.mxu0 %v1380
        %1900 = vmatpush1.bf16.msra.mxu0 %v1379
        %1901 = vmatprep.subr.bf16.mxu0 %v1376
        %1902 = vmatpush1.bf16.msra.mxu0 %v1375
        %1903 = vmatprep.subr.bf16.mxu0 %v1436
        %1904 = vmatpush2.bf16.msra.mxu0 %v1435
        %1905 = vmatprep.subr.bf16.mxu0 %v1432
        %1906 = vmatpush2.bf16.msra.mxu0 %v1431
        %1907 = vmatprep.subr.bf16.mxu0 %v1428
        %1908 = vmatpush2.bf16.msra.mxu0 %v1427
        %1909 = vmatprep.subr.bf16.mxu0 %v1424
        %1910 = vmatpush2.bf16.msra.mxu0 %v1423
        %1911 = vmatprep.subr.bf16.mxu0 %v1420
        %1912 = vmatpush2.bf16.msra.mxu0 %v1419
        %1913 = vmatprep.subr.bf16.mxu0 %v1416
        %1914 = vmatpush2.bf16.msra.mxu0 %v1415
        %1915 = vmatprep.subr.bf16.mxu0 %v1412
        %1916 = vmatpush2.bf16.msra.mxu0 %v1411
        %1917 = vmatprep.subr.bf16.mxu0 %v1408
        %1918 = vmatpush2.bf16.msra.mxu0 %v1407
        %1919 = vmatprep.mubr.bf16.mxu0 %v592
        %1920 = vmatmul.mubr.bf16.gmra.mxu0 %v591
        %v1921 = vpop.f32.mrf.mxu0
        %v1922 = vadd.f32 %v562, %v1921
        %v1923 = vpop.f32.mrf.mxu0
        %v1924 = vadd.f32 %v566, %v1923
        %v1925 = vpop.f32.mrf.mxu0
        %v1926 = vpop.f32.mrf.mxu0
        %1927 = vdwg.mxu0
        %1928 = vmatprep.subr.bf16.mxu0 %v1468
        %1929 = vmatpush1.bf16.msra.mxu0 %v1467
        %1930 = vmatprep.subr.bf16.mxu0 %v1464
        %1931 = vmatpush1.bf16.msra.mxu0 %v1463
        %1932 = vmatprep.subr.bf16.mxu0 %v1460
        %1933 = vmatpush1.bf16.msra.mxu0 %v1459
        %1934 = vmatprep.subr.bf16.mxu0 %v1456
        %1935 = vmatpush1.bf16.msra.mxu0 %v1455
        %1936 = vmatprep.subr.bf16.mxu0 %v1452
        %1937 = vmatpush1.bf16.msra.mxu0 %v1451
        %1938 = vmatprep.subr.bf16.mxu0 %v1448
        %1939 = vmatpush1.bf16.msra.mxu0 %v1447
        %1940 = vmatprep.subr.bf16.mxu0 %v1444
        %1941 = vmatpush1.bf16.msra.mxu0 %v1443
        %1942 = vmatprep.subr.bf16.mxu0 %v1440
        %1943 = vmatpush1.bf16.msra.mxu0 %v1439
        %1944 = vmatprep.subr.bf16.mxu0 %v1500
        %1945 = vmatpush2.bf16.msra.mxu0 %v1499
        %1946 = vmatprep.subr.bf16.mxu0 %v1496
        %1947 = vmatpush2.bf16.msra.mxu0 %v1495
        %1948 = vmatprep.subr.bf16.mxu0 %v1492
        %1949 = vmatpush2.bf16.msra.mxu0 %v1491
        %1950 = vmatprep.subr.bf16.mxu0 %v1488
        %1951 = vmatpush2.bf16.msra.mxu0 %v1487
        %1952 = vmatprep.subr.bf16.mxu0 %v1484
        %1953 = vmatpush2.bf16.msra.mxu0 %v1483
        %1954 = vmatprep.subr.bf16.mxu0 %v1480
        %1955 = vmatpush2.bf16.msra.mxu0 %v1479
        %1956 = vmatprep.subr.bf16.mxu0 %v1476
        %1957 = vmatpush2.bf16.msra.mxu0 %v1475
        %1958 = vmatprep.subr.bf16.mxu0 %v1472
        %1959 = vmatpush2.bf16.msra.mxu0 %v1471
        %1960 = vmatprep.mubr.bf16.mxu0 %v594
        %1961 = vmatmul.mubr.bf16.gmra.mxu0 %v593
        %v1962 = vpop.f32.mrf.mxu0
        %v1963 = vadd.f32 %v1922, %v1962
        %v1964 = vpop.f32.mrf.mxu0
        %v1965 = vadd.f32 %v1924, %v1964
        %v1966 = vpop.f32.mrf.mxu0
        %v1967 = vpop.f32.mrf.mxu0
        %1968 = vdwg.mxu0
        %1969 = vmatprep.subr.bf16.mxu0 %v1532
        %1970 = vmatpush1.bf16.msra.mxu0 %v1531
        %1971 = vmatprep.subr.bf16.mxu0 %v1528
        %1972 = vmatpush1.bf16.msra.mxu0 %v1527
        %1973 = vmatprep.subr.bf16.mxu0 %v1524
        %1974 = vmatpush1.bf16.msra.mxu0 %v1523
        %1975 = vmatprep.subr.bf16.mxu0 %v1520
        %1976 = vmatpush1.bf16.msra.mxu0 %v1519
        %1977 = vmatprep.subr.bf16.mxu0 %v1516
        %1978 = vmatpush1.bf16.msra.mxu0 %v1515
        %1979 = vmatprep.subr.bf16.mxu0 %v1512
        %1980 = vmatpush1.bf16.msra.mxu0 %v1511
        %1981 = vmatprep.subr.bf16.mxu0 %v1508
        %1982 = vmatpush1.bf16.msra.mxu0 %v1507
        %1983 = vmatprep.subr.bf16.mxu0 %v1504
        %1984 = vmatpush1.bf16.msra.mxu0 %v1503
        %1985 = vmatprep.subr.bf16.mxu0 %v1564
        %1986 = vmatpush2.bf16.msra.mxu0 %v1563
        %1987 = vmatprep.subr.bf16.mxu0 %v1560
        %1988 = vmatpush2.bf16.msra.mxu0 %v1559
        %1989 = vmatprep.subr.bf16.mxu0 %v1556
        %1990 = vmatpush2.bf16.msra.mxu0 %v1555
        %1991 = vmatprep.subr.bf16.mxu0 %v1552
        %1992 = vmatpush2.bf16.msra.mxu0 %v1551
        %1993 = vmatprep.subr.bf16.mxu0 %v1548
        %1994 = vmatpush2.bf16.msra.mxu0 %v1547
        %1995 = vmatprep.subr.bf16.mxu0 %v1544
        %1996 = vmatpush2.bf16.msra.mxu0 %v1543
        %1997 = vmatprep.subr.bf16.mxu0 %v1540
        %1998 = vmatpush2.bf16.msra.mxu0 %v1539
        %1999 = vmatprep.subr.bf16.mxu0 %v1536
        %2000 = vmatpush2.bf16.msra.mxu0 %v1535
        %2001 = vmatprep.mubr.bf16.mxu0 %v596
        %2002 = vmatmul.mubr.bf16.gmra.mxu0 %v595
        %v2003 = vpop.f32.mrf.mxu0
        %v2004 = vadd.f32 %v1963, %v2003
        %v2005 = vpop.f32.mrf.mxu0
        %v2006 = vadd.f32 %v1965, %v2005
        %v2007 = vpop.f32.mrf.mxu0
        %v2008 = vpop.f32.mrf.mxu0
        %2009 = vdwg.mxu0
        %2010 = vmatprep.subr.bf16.mxu0 %v1596
        %2011 = vmatpush1.bf16.msra.mxu0 %v1595
        %2012 = vmatprep.subr.bf16.mxu0 %v1592
        %2013 = vmatpush1.bf16.msra.mxu0 %v1591
        %2014 = vmatprep.subr.bf16.mxu0 %v1588
        %2015 = vmatpush1.bf16.msra.mxu0 %v1587
        %2016 = vmatprep.subr.bf16.mxu0 %v1584
        %2017 = vmatpush1.bf16.msra.mxu0 %v1583
        %2018 = vmatprep.subr.bf16.mxu0 %v1580
        %2019 = vmatpush1.bf16.msra.mxu0 %v1579
        %2020 = vmatprep.subr.bf16.mxu0 %v1576
        %2021 = vmatpush1.bf16.msra.mxu0 %v1575
        %2022 = vmatprep.subr.bf16.mxu0 %v1572
        %2023 = vmatpush1.bf16.msra.mxu0 %v1571
        %2024 = vmatprep.subr.bf16.mxu0 %v1568
        %2025 = vmatpush1.bf16.msra.mxu0 %v1567
        %2026 = vmatprep.subr.bf16.mxu0 %v1628
        %2027 = vmatpush2.bf16.msra.mxu0 %v1627
        %2028 = vmatprep.subr.bf16.mxu0 %v1624
        %2029 = vmatpush2.bf16.msra.mxu0 %v1623
        %2030 = vmatprep.subr.bf16.mxu0 %v1620
        %2031 = vmatpush2.bf16.msra.mxu0 %v1619
        %2032 = vmatprep.subr.bf16.mxu0 %v1616
        %2033 = vmatpush2.bf16.msra.mxu0 %v1615
        %2034 = vmatprep.subr.bf16.mxu0 %v1612
        %2035 = vmatpush2.bf16.msra.mxu0 %v1611
        %2036 = vmatprep.subr.bf16.mxu0 %v1608
        %2037 = vmatpush2.bf16.msra.mxu0 %v1607
        %2038 = vmatprep.subr.bf16.mxu0 %v1604
        %2039 = vmatpush2.bf16.msra.mxu0 %v1603
        %2040 = vmatprep.subr.bf16.mxu0 %v1600
        %2041 = vmatpush2.bf16.msra.mxu0 %v1599
        %2042 = vmatprep.mubr.bf16.mxu0 %v598
        %2043 = vmatmul.mubr.bf16.gmra.mxu0 %v597
        %v2044 = vpop.f32.mrf.mxu0
        %v2045 = vadd.f32 %v2004, %v2044
        %v2046 = vpop.f32.mrf.mxu0
        %v2047 = vadd.f32 %v2006, %v2046
        %v2048 = vpop.f32.mrf.mxu0
        %v2049 = vpop.f32.mrf.mxu0
        %2050 = vdwg.mxu0
        %2051 = vmatprep.subr.bf16.mxu0 %v1406
        %2052 = vmatpush1.bf16.msra.mxu0 %v1405
        %2053 = vmatprep.subr.bf16.mxu0 %v1402
        %2054 = vmatpush1.bf16.msra.mxu0 %v1401
        %2055 = vmatprep.subr.bf16.mxu0 %v1398
        %2056 = vmatpush1.bf16.msra.mxu0 %v1397
        %2057 = vmatprep.subr.bf16.mxu0 %v1394
        %2058 = vmatpush1.bf16.msra.mxu0 %v1393
        %2059 = vmatprep.subr.bf16.mxu0 %v1390
        %2060 = vmatpush1.bf16.msra.mxu0 %v1389
        %2061 = vmatprep.subr.bf16.mxu0 %v1386
        %2062 = vmatpush1.bf16.msra.mxu0 %v1385
        %2063 = vmatprep.subr.bf16.mxu0 %v1382
        %2064 = vmatpush1.bf16.msra.mxu0 %v1381
        %2065 = vmatprep.subr.bf16.mxu0 %v1378
        %2066 = vmatpush1.bf16.msra.mxu0 %v1377
        %2067 = vmatprep.subr.bf16.mxu0 %v1438
        %2068 = vmatpush2.bf16.msra.mxu0 %v1437
        %2069 = vmatprep.subr.bf16.mxu0 %v1434
        %2070 = vmatpush2.bf16.msra.mxu0 %v1433
        %2071 = vmatprep.subr.bf16.mxu0 %v1430
        %2072 = vmatpush2.bf16.msra.mxu0 %v1429
        %2073 = vmatprep.subr.bf16.mxu0 %v1426
        %2074 = vmatpush2.bf16.msra.mxu0 %v1425
        %2075 = vmatprep.subr.bf16.mxu0 %v1422
        %2076 = vmatpush2.bf16.msra.mxu0 %v1421
        %2077 = vmatprep.subr.bf16.mxu0 %v1418
        %2078 = vmatpush2.bf16.msra.mxu0 %v1417
        %2079 = vmatprep.subr.bf16.mxu0 %v1414
        %2080 = vmatpush2.bf16.msra.mxu0 %v1413
        %2081 = vmatprep.subr.bf16.mxu0 %v1410
        %2082 = vmatpush2.bf16.msra.mxu0 %v1409
        %2083 = vmatprep.mubr.bf16.mxu0 %v592
        %2084 = vmatmul.mubr.bf16.gmra.mxu0 %v591
        %v2085 = vpop.f32.mrf.mxu0
        %v2086 = vadd.f32 %v570, %v2085
        %v2087 = vpop.f32.mrf.mxu0
        %v2088 = vadd.f32 %v574, %v2087
        %v2089 = vpop.f32.mrf.mxu0
        %v2090 = vpop.f32.mrf.mxu0
        %2091 = vdwg.mxu0
        %2092 = vmatprep.subr.bf16.mxu0 %v1470
        %2093 = vmatpush1.bf16.msra.mxu0 %v1469
        %2094 = vmatprep.subr.bf16.mxu0 %v1466
        %2095 = vmatpush1.bf16.msra.mxu0 %v1465
        %2096 = vmatprep.subr.bf16.mxu0 %v1462
        %2097 = vmatpush1.bf16.msra.mxu0 %v1461
        %2098 = vmatprep.subr.bf16.mxu0 %v1458
        %2099 = vmatpush1.bf16.msra.mxu0 %v1457
        %2100 = vmatprep.subr.bf16.mxu0 %v1454
        %2101 = vmatpush1.bf16.msra.mxu0 %v1453
        %2102 = vmatprep.subr.bf16.mxu0 %v1450
        %2103 = vmatpush1.bf16.msra.mxu0 %v1449
        %2104 = vmatprep.subr.bf16.mxu0 %v1446
        %2105 = vmatpush1.bf16.msra.mxu0 %v1445
        %2106 = vmatprep.subr.bf16.mxu0 %v1442
        %2107 = vmatpush1.bf16.msra.mxu0 %v1441
        %2108 = vmatprep.subr.bf16.mxu0 %v1502
        %2109 = vmatpush2.bf16.msra.mxu0 %v1501
        %2110 = vmatprep.subr.bf16.mxu0 %v1498
        %2111 = vmatpush2.bf16.msra.mxu0 %v1497
        %2112 = vmatprep.subr.bf16.mxu0 %v1494
        %2113 = vmatpush2.bf16.msra.mxu0 %v1493
        %2114 = vmatprep.subr.bf16.mxu0 %v1490
        %2115 = vmatpush2.bf16.msra.mxu0 %v1489
        %2116 = vmatprep.subr.bf16.mxu0 %v1486
        %2117 = vmatpush2.bf16.msra.mxu0 %v1485
        %2118 = vmatprep.subr.bf16.mxu0 %v1482
        %2119 = vmatpush2.bf16.msra.mxu0 %v1481
        %2120 = vmatprep.subr.bf16.mxu0 %v1478
        %2121 = vmatpush2.bf16.msra.mxu0 %v1477
        %2122 = vmatprep.subr.bf16.mxu0 %v1474
        %2123 = vmatpush2.bf16.msra.mxu0 %v1473
        %2124 = vmatprep.mubr.bf16.mxu0 %v594
        %2125 = vmatmul.mubr.bf16.gmra.mxu0 %v593
        %v2126 = vpop.f32.mrf.mxu0
        %v2127 = vadd.f32 %v2086, %v2126
        %v2128 = vpop.f32.mrf.mxu0
        %v2129 = vadd.f32 %v2088, %v2128
        %v2130 = vpop.f32.mrf.mxu0
        %v2131 = vpop.f32.mrf.mxu0
        %2132 = vdwg.mxu0
        %2133 = vmatprep.subr.bf16.mxu0 %v1534
        %2134 = vmatpush1.bf16.msra.mxu0 %v1533
        %2135 = vmatprep.subr.bf16.mxu0 %v1530
        %2136 = vmatpush1.bf16.msra.mxu0 %v1529
        %2137 = vmatprep.subr.bf16.mxu0 %v1526
        %2138 = vmatpush1.bf16.msra.mxu0 %v1525
        %2139 = vmatprep.subr.bf16.mxu0 %v1522
        %2140 = vmatpush1.bf16.msra.mxu0 %v1521
        %2141 = vmatprep.subr.bf16.mxu0 %v1518
        %2142 = vmatpush1.bf16.msra.mxu0 %v1517
        %2143 = vmatprep.subr.bf16.mxu0 %v1514
        %2144 = vmatpush1.bf16.msra.mxu0 %v1513
        %2145 = vmatprep.subr.bf16.mxu0 %v1510
        %2146 = vmatpush1.bf16.msra.mxu0 %v1509
        %2147 = vmatprep.subr.bf16.mxu0 %v1506
        %2148 = vmatpush1.bf16.msra.mxu0 %v1505
        %2149 = vmatprep.subr.bf16.mxu0 %v1566
        %2150 = vmatpush2.bf16.msra.mxu0 %v1565
        %2151 = vmatprep.subr.bf16.mxu0 %v1562
        %2152 = vmatpush2.bf16.msra.mxu0 %v1561
        %2153 = vmatprep.subr.bf16.mxu0 %v1558
        %2154 = vmatpush2.bf16.msra.mxu0 %v1557
        %2155 = vmatprep.subr.bf16.mxu0 %v1554
        %2156 = vmatpush2.bf16.msra.mxu0 %v1553
        %2157 = vmatprep.subr.bf16.mxu0 %v1550
        %2158 = vmatpush2.bf16.msra.mxu0 %v1549
        %2159 = vmatprep.subr.bf16.mxu0 %v1546
        %2160 = vmatpush2.bf16.msra.mxu0 %v1545
        %2161 = vmatprep.subr.bf16.mxu0 %v1542
        %2162 = vmatpush2.bf16.msra.mxu0 %v1541
        %2163 = vmatprep.subr.bf16.mxu0 %v1538
        %2164 = vmatpush2.bf16.msra.mxu0 %v1537
        %2165 = vmatprep.mubr.bf16.mxu0 %v596
        %2166 = vmatmul.mubr.bf16.gmra.mxu0 %v595
        %v2167 = vpop.f32.mrf.mxu0
        %v2168 = vadd.f32 %v2127, %v2167
        %v2169 = vpop.f32.mrf.mxu0
        %v2170 = vadd.f32 %v2129, %v2169
        %v2171 = vpop.f32.mrf.mxu0
        %v2172 = vpop.f32.mrf.mxu0
        %2173 = vdwg.mxu0
        %2174 = vmatprep.subr.bf16.mxu0 %v1598
        %2175 = vmatpush1.bf16.msra.mxu0 %v1597
        %2176 = vmatprep.subr.bf16.mxu0 %v1594
        %2177 = vmatpush1.bf16.msra.mxu0 %v1593
        %2178 = vmatprep.subr.bf16.mxu0 %v1590
        %2179 = vmatpush1.bf16.msra.mxu0 %v1589
        %2180 = vmatprep.subr.bf16.mxu0 %v1586
        %2181 = vmatpush1.bf16.msra.mxu0 %v1585
        %2182 = vmatprep.subr.bf16.mxu0 %v1582
        %2183 = vmatpush1.bf16.msra.mxu0 %v1581
        %2184 = vmatprep.subr.bf16.mxu0 %v1578
        %2185 = vmatpush1.bf16.msra.mxu0 %v1577
        %2186 = vmatprep.subr.bf16.mxu0 %v1574
        %2187 = vmatpush1.bf16.msra.mxu0 %v1573
        %2188 = vmatprep.subr.bf16.mxu0 %v1570
        %2189 = vmatpush1.bf16.msra.mxu0 %v1569
        %2190 = vmatprep.subr.bf16.mxu0 %v1630
        %2191 = vmatpush2.bf16.msra.mxu0 %v1629
        %2192 = vmatprep.subr.bf16.mxu0 %v1626
        %2193 = vmatpush2.bf16.msra.mxu0 %v1625
        %2194 = vmatprep.subr.bf16.mxu0 %v1622
        %2195 = vmatpush2.bf16.msra.mxu0 %v1621
        %2196 = vmatprep.subr.bf16.mxu0 %v1618
        %2197 = vmatpush2.bf16.msra.mxu0 %v1617
        %2198 = vmatprep.subr.bf16.mxu0 %v1614
        %2199 = vmatpush2.bf16.msra.mxu0 %v1613
        %2200 = vmatprep.subr.bf16.mxu0 %v1610
        %2201 = vmatpush2.bf16.msra.mxu0 %v1609
        %2202 = vmatprep.subr.bf16.mxu0 %v1606
        %2203 = vmatpush2.bf16.msra.mxu0 %v1605
        %2204 = vmatprep.subr.bf16.mxu0 %v1602
        %2205 = vmatpush2.bf16.msra.mxu0 %v1601
        %2206 = vmatprep.mubr.bf16.mxu0 %v598
        %2207 = vmatmul.mubr.bf16.gmra.mxu0 %v597
        %v2208 = vpop.f32.mrf.mxu0
        %v2209 = vadd.f32 %v2168, %v2208
        %v2210 = vpop.f32.mrf.mxu0
        %v2211 = vadd.f32 %v2170, %v2210
        %v2212 = vpop.f32.mrf.mxu0
        %v2213 = vpop.f32.mrf.mxu0
        %2214 = vdwg.mxu0
        %v2215 = vmax.f32 %v2045, 0.0
        %v2216 = vmax.f32 %v2047, 0.0
        %v2217 = vmax.f32 %v2209, 0.0
        %v2218 = vmax.f32 %v2211, 0.0
        %v2219 = vpack.c.bf16 %v2215, %v2215
        %v2220 = vpack.c.bf16 %v2216, %v2216
        %v2221 = vpack.c.bf16 %v2217, %v2217
        %v2222 = vpack.c.bf16 %v2218, %v2218
        %v2223 = vld [vmem:[%s254] sm:$0xff]
        %v2224 = vld [vmem:[%s254 + $0x8] sm:$0xff]
        %v2225 = vld [vmem:[%s254 + $0x10] sm:$0xff]
        %v2226 = vld [vmem:[%s254 + $0x18] sm:$0xff]
        %v2227 = vld [vmem:[%s254 + $0x20] sm:$0xff]
        %v2228 = vld [vmem:[%s254 + $0x28] sm:$0xff]
        %v2229 = vld [vmem:[%s254 + $0x30] sm:$0xff]
        %v2230 = vld [vmem:[%s254 + $0x38] sm:$0xff]
        %v2231 = vld [vmem:[%s254 + $0x40] sm:$0xff]
        %v2232 = vld [vmem:[%s254 + $0x48] sm:$0xff]
        %v2233 = vld [vmem:[%s254 + $0x50] sm:$0xff]
        %v2234 = vld [vmem:[%s254 + $0x58] sm:$0xff]
        %v2235 = vld [vmem:[%s254 + $0x60] sm:$0xff]
        %v2236 = vld [vmem:[%s254 + $0x68] sm:$0xff]
        %v2237 = vld [vmem:[%s254 + $0x70] sm:$0xff]
        %v2238 = vld [vmem:[%s254 + $0x78] sm:$0xff]
        %v2239 = vld [vmem:[%s254 + $0x80] sm:$0xff]
        %v2240 = vld [vmem:[%s254 + $0x88] sm:$0xff]
        %v2241 = vld [vmem:[%s254 + $0x90] sm:$0xff]
        %v2242 = vld [vmem:[%s254 + $0x98] sm:$0xff]
        %v2243 = vld [vmem:[%s254 + $0xa0] sm:$0xff]
        %v2244 = vld [vmem:[%s254 + $0xa8] sm:$0xff]
        %v2245 = vld [vmem:[%s254 + $0xb0] sm:$0xff]
        %v2246 = vld [vmem:[%s254 + $0xb8] sm:$0xff]
        %v2247 = vld [vmem:[%s254 + $0xc0] sm:$0xff]
        %v2248 = vld [vmem:[%s254 + $0xc8] sm:$0xff]
        %v2249 = vld [vmem:[%s254 + $0xd0] sm:$0xff]
        %v2250 = vld [vmem:[%s254 + $0xd8] sm:$0xff]
        %v2251 = vld [vmem:[%s254 + $0xe0] sm:$0xff]
        %v2252 = vld [vmem:[%s254 + $0xe8] sm:$0xff]
        %v2253 = vld [vmem:[%s254 + $0xf0] sm:$0xff]
        %v2254 = vld [vmem:[%s254 + $0xf8] sm:$0xff]
        %v2255 = vld [vmem:[%s254 + $0x100] sm:$0xff]
        %v2256 = vld [vmem:[%s254 + $0x108] sm:$0xff]
        %v2257 = vld [vmem:[%s254 + $0x110] sm:$0xff]
        %v2258 = vld [vmem:[%s254 + $0x118] sm:$0xff]
        %v2259 = vld [vmem:[%s254 + $0x120] sm:$0xff]
        %v2260 = vld [vmem:[%s254 + $0x128] sm:$0xff]
        %v2261 = vld [vmem:[%s254 + $0x130] sm:$0xff]
        %v2262 = vld [vmem:[%s254 + $0x138] sm:$0xff]
        %v2263 = vld [vmem:[%s254 + $0x140] sm:$0xff]
        %v2264 = vld [vmem:[%s254 + $0x148] sm:$0xff]
        %v2265 = vld [vmem:[%s254 + $0x150] sm:$0xff]
        %v2266 = vld [vmem:[%s254 + $0x158] sm:$0xff]
        %v2267 = vld [vmem:[%s254 + $0x160] sm:$0xff]
        %v2268 = vld [vmem:[%s254 + $0x168] sm:$0xff]
        %v2269 = vld [vmem:[%s254 + $0x170] sm:$0xff]
        %v2270 = vld [vmem:[%s254 + $0x178] sm:$0xff]
        %v2271 = vld [vmem:[%s254 + $0x180] sm:$0xff]
        %v2272 = vld [vmem:[%s254 + $0x188] sm:$0xff]
        %v2273 = vld [vmem:[%s254 + $0x190] sm:$0xff]
        %v2274 = vld [vmem:[%s254 + $0x198] sm:$0xff]
        %v2275 = vld [vmem:[%s254 + $0x1a0] sm:$0xff]
        %v2276 = vld [vmem:[%s254 + $0x1a8] sm:$0xff]
        %v2277 = vld [vmem:[%s254 + $0x1b0] sm:$0xff]
        %v2278 = vld [vmem:[%s254 + $0x1b8] sm:$0xff]
        %v2279 = vld [vmem:[%s254 + $0x1c0] sm:$0xff]
        %v2280 = vld [vmem:[%s254 + $0x1c8] sm:$0xff]
        %v2281 = vld [vmem:[%s254 + $0x1d0] sm:$0xff]
        %v2282 = vld [vmem:[%s254 + $0x1d8] sm:$0xff]
        %v2283 = vld [vmem:[%s254 + $0x1e0] sm:$0xff]
        %v2284 = vld [vmem:[%s254 + $0x1e8] sm:$0xff]
        %v2285 = vld [vmem:[%s254 + $0x1f0] sm:$0xff]
        %v2286 = vld [vmem:[%s254 + $0x1f8] sm:$0xff]
        %v2351 = vunpack.c.l.b16 %v2223
        %v2352 = vunpack.c.h.b16 %v2223
        %v2353 = vunpack.c.l.b16 %v2224
        %v2354 = vunpack.c.h.b16 %v2224
        %v2355 = vunpack.c.l.b16 %v2225
        %v2356 = vunpack.c.h.b16 %v2225
        %v2357 = vunpack.c.l.b16 %v2226
        %v2358 = vunpack.c.h.b16 %v2226
        %v2359 = vunpack.c.l.b16 %v2227
        %v2360 = vunpack.c.h.b16 %v2227
        %v2361 = vunpack.c.l.b16 %v2228
        %v2362 = vunpack.c.h.b16 %v2228
        %v2363 = vunpack.c.l.b16 %v2229
        %v2364 = vunpack.c.h.b16 %v2229
        %v2365 = vunpack.c.l.b16 %v2230
        %v2366 = vunpack.c.h.b16 %v2230
        %v2367 = vunpack.c.l.b16 %v2231
        %v2368 = vunpack.c.h.b16 %v2231
        %v2369 = vunpack.c.l.b16 %v2232
        %v2370 = vunpack.c.h.b16 %v2232
        %v2371 = vunpack.c.l.b16 %v2233
        %v2372 = vunpack.c.h.b16 %v2233
        %v2373 = vunpack.c.l.b16 %v2234
        %v2374 = vunpack.c.h.b16 %v2234
        %v2375 = vunpack.c.l.b16 %v2235
        %v2376 = vunpack.c.h.b16 %v2235
        %v2377 = vunpack.c.l.b16 %v2236
        %v2378 = vunpack.c.h.b16 %v2236
        %v2379 = vunpack.c.l.b16 %v2237
        %v2380 = vunpack.c.h.b16 %v2237
        %v2381 = vunpack.c.l.b16 %v2238
        %v2382 = vunpack.c.h.b16 %v2238
        %v2383 = vunpack.c.l.b16 %v2239
        %v2384 = vunpack.c.h.b16 %v2239
        %v2385 = vunpack.c.l.b16 %v2240
        %v2386 = vunpack.c.h.b16 %v2240
        %v2387 = vunpack.c.l.b16 %v2241
        %v2388 = vunpack.c.h.b16 %v2241
        %v2389 = vunpack.c.l.b16 %v2242
        %v2390 = vunpack.c.h.b16 %v2242
        %v2391 = vunpack.c.l.b16 %v2243
        %v2392 = vunpack.c.h.b16 %v2243
        %v2393 = vunpack.c.l.b16 %v2244
        %v2394 = vunpack.c.h.b16 %v2244
        %v2395 = vunpack.c.l.b16 %v2245
        %v2396 = vunpack.c.h.b16 %v2245
        %v2397 = vunpack.c.l.b16 %v2246
        %v2398 = vunpack.c.h.b16 %v2246
        %v2399 = vunpack.c.l.b16 %v2247
        %v2400 = vunpack.c.h.b16 %v2247
        %v2401 = vunpack.c.l.b16 %v2248
        %v2402 = vunpack.c.h.b16 %v2248
        %v2403 = vunpack.c.l.b16 %v2249
        %v2404 = vunpack.c.h.b16 %v2249
        %v2405 = vunpack.c.l.b16 %v2250
        %v2406 = vunpack.c.h.b16 %v2250
        %v2407 = vunpack.c.l.b16 %v2251
        %v2408 = vunpack.c.h.b16 %v2251
        %v2409 = vunpack.c.l.b16 %v2252
        %v2410 = vunpack.c.h.b16 %v2252
        %v2411 = vunpack.c.l.b16 %v2253
        %v2412 = vunpack.c.h.b16 %v2253
        %v2413 = vunpack.c.l.b16 %v2254
        %v2414 = vunpack.c.h.b16 %v2254
        %v2415 = vunpack.c.l.b16 %v2255
        %v2416 = vunpack.c.h.b16 %v2255
        %v2417 = vunpack.c.l.b16 %v2256
        %v2418 = vunpack.c.h.b16 %v2256
        %v2419 = vunpack.c.l.b16 %v2257
        %v2420 = vunpack.c.h.b16 %v2257
        %v2421 = vunpack.c.l.b16 %v2258
        %v2422 = vunpack.c.h.b16 %v2258
        %v2423 = vunpack.c.l.b16 %v2259
        %v2424 = vunpack.c.h.b16 %v2259
        %v2425 = vunpack.c.l.b16 %v2260
        %v2426 = vunpack.c.h.b16 %v2260
        %v2427 = vunpack.c.l.b16 %v2261
        %v2428 = vunpack.c.h.b16 %v2261
        %v2429 = vunpack.c.l.b16 %v2262
        %v2430 = vunpack.c.h.b16 %v2262
        %v2431 = vunpack.c.l.b16 %v2263
        %v2432 = vunpack.c.h.b16 %v2263
        %v2433 = vunpack.c.l.b16 %v2264
        %v2434 = vunpack.c.h.b16 %v2264
        %v2435 = vunpack.c.l.b16 %v2265
        %v2436 = vunpack.c.h.b16 %v2265
        %v2437 = vunpack.c.l.b16 %v2266
        %v2438 = vunpack.c.h.b16 %v2266
        %v2439 = vunpack.c.l.b16 %v2267
        %v2440 = vunpack.c.h.b16 %v2267
        %v2441 = vunpack.c.l.b16 %v2268
        %v2442 = vunpack.c.h.b16 %v2268
        %v2443 = vunpack.c.l.b16 %v2269
        %v2444 = vunpack.c.h.b16 %v2269
        %v2445 = vunpack.c.l.b16 %v2270
        %v2446 = vunpack.c.h.b16 %v2270
        %v2447 = vunpack.c.l.b16 %v2271
        %v2448 = vunpack.c.h.b16 %v2271
        %v2449 = vunpack.c.l.b16 %v2272
        %v2450 = vunpack.c.h.b16 %v2272
        %v2451 = vunpack.c.l.b16 %v2273
        %v2452 = vunpack.c.h.b16 %v2273
        %v2453 = vunpack.c.l.b16 %v2274
        %v2454 = vunpack.c.h.b16 %v2274
        %v2455 = vunpack.c.l.b16 %v2275
        %v2456 = vunpack.c.h.b16 %v2275
        %v2457 = vunpack.c.l.b16 %v2276
        %v2458 = vunpack.c.h.b16 %v2276
        %v2459 = vunpack.c.l.b16 %v2277
        %v2460 = vunpack.c.h.b16 %v2277
        %v2461 = vunpack.c.l.b16 %v2278
        %v2462 = vunpack.c.h.b16 %v2278
        %v2463 = vunpack.c.l.b16 %v2279
        %v2464 = vunpack.c.h.b16 %v2279
        %v2465 = vunpack.c.l.b16 %v2280
        %v2466 = vunpack.c.h.b16 %v2280
        %v2467 = vunpack.c.l.b16 %v2281
        %v2468 = vunpack.c.h.b16 %v2281
        %v2469 = vunpack.c.l.b16 %v2282
        %v2470 = vunpack.c.h.b16 %v2282
        %v2471 = vunpack.c.l.b16 %v2283
        %v2472 = vunpack.c.h.b16 %v2283
        %v2473 = vunpack.c.l.b16 %v2284
        %v2474 = vunpack.c.h.b16 %v2284
        %v2475 = vunpack.c.l.b16 %v2285
        %v2476 = vunpack.c.h.b16 %v2285
        %v2477 = vunpack.c.l.b16 %v2286
        %v2478 = vunpack.c.h.b16 %v2286
        %v2479 = vpack.c.b16 %v2353, %v2351
        %v2480 = vpack.c.b16 %v2354, %v2352
        %v2481 = vpack.c.b16 %v2357, %v2355
        %v2482 = vpack.c.b16 %v2358, %v2356
        %v2483 = vpack.c.b16 %v2361, %v2359
        %v2484 = vpack.c.b16 %v2362, %v2360
        %v2485 = vpack.c.b16 %v2365, %v2363
        %v2486 = vpack.c.b16 %v2366, %v2364
        %v2487 = vpack.c.b16 %v2369, %v2367
        %v2488 = vpack.c.b16 %v2370, %v2368
        %v2489 = vpack.c.b16 %v2373, %v2371
        %v2490 = vpack.c.b16 %v2374, %v2372
        %v2491 = vpack.c.b16 %v2377, %v2375
        %v2492 = vpack.c.b16 %v2378, %v2376
        %v2493 = vpack.c.b16 %v2381, %v2379
        %v2494 = vpack.c.b16 %v2382, %v2380
        %v2495 = vpack.c.b16 %v2385, %v2383
        %v2496 = vpack.c.b16 %v2386, %v2384
        %v2497 = vpack.c.b16 %v2389, %v2387
        %v2498 = vpack.c.b16 %v2390, %v2388
        %v2499 = vpack.c.b16 %v2393, %v2391
        %v2500 = vpack.c.b16 %v2394, %v2392
        %v2501 = vpack.c.b16 %v2397, %v2395
        %v2502 = vpack.c.b16 %v2398, %v2396
        %v2503 = vpack.c.b16 %v2401, %v2399
        %v2504 = vpack.c.b16 %v2402, %v2400
        %v2505 = vpack.c.b16 %v2405, %v2403
        %v2506 = vpack.c.b16 %v2406, %v2404
        %v2507 = vpack.c.b16 %v2409, %v2407
        %v2508 = vpack.c.b16 %v2410, %v2408
        %v2509 = vpack.c.b16 %v2413, %v2411
        %v2510 = vpack.c.b16 %v2414, %v2412
        %v2511 = vpack.c.b16 %v2417, %v2415
        %v2512 = vpack.c.b16 %v2418, %v2416
        %v2513 = vpack.c.b16 %v2421, %v2419
        %v2514 = vpack.c.b16 %v2422, %v2420
        %v2515 = vpack.c.b16 %v2425, %v2423
        %v2516 = vpack.c.b16 %v2426, %v2424
        %v2517 = vpack.c.b16 %v2429, %v2427
        %v2518 = vpack.c.b16 %v2430, %v2428
        %v2519 = vpack.c.b16 %v2433, %v2431
        %v2520 = vpack.c.b16 %v2434, %v2432
        %v2521 = vpack.c.b16 %v2437, %v2435
        %v2522 = vpack.c.b16 %v2438, %v2436
        %v2523 = vpack.c.b16 %v2441, %v2439
        %v2524 = vpack.c.b16 %v2442, %v2440
        %v2525 = vpack.c.b16 %v2445, %v2443
        %v2526 = vpack.c.b16 %v2446, %v2444
        %v2527 = vpack.c.b16 %v2449, %v2447
        %v2528 = vpack.c.b16 %v2450, %v2448
        %v2529 = vpack.c.b16 %v2453, %v2451
        %v2530 = vpack.c.b16 %v2454, %v2452
        %v2531 = vpack.c.b16 %v2457, %v2455
        %v2532 = vpack.c.b16 %v2458, %v2456
        %v2533 = vpack.c.b16 %v2461, %v2459
        %v2534 = vpack.c.b16 %v2462, %v2460
        %v2535 = vpack.c.b16 %v2465, %v2463
        %v2536 = vpack.c.b16 %v2466, %v2464
        %v2537 = vpack.c.b16 %v2469, %v2467
        %v2538 = vpack.c.b16 %v2470, %v2468
        %v2539 = vpack.c.b16 %v2473, %v2471
        %v2540 = vpack.c.b16 %v2474, %v2472
        %v2541 = vpack.c.b16 %v2477, %v2475
        %v2542 = vpack.c.b16 %v2478, %v2476
        %2607 = vmatprep.subr.bf16.mxu0 %v2494
        %2608 = vmatpush1.bf16.msra.mxu0 %v2493
        %2609 = vmatprep.subr.bf16.mxu0 %v2492
        %2610 = vmatpush1.bf16.msra.mxu0 %v2491
        %2611 = vmatprep.subr.bf16.mxu0 %v2490
        %2612 = vmatpush1.bf16.msra.mxu0 %v2489
        %2613 = vmatprep.subr.bf16.mxu0 %v2488
        %2614 = vmatpush1.bf16.msra.mxu0 %v2487
        %2615 = vmatprep.subr.bf16.mxu0 %v2486
        %2616 = vmatpush1.bf16.msra.mxu0 %v2485
        %2617 = vmatprep.subr.bf16.mxu0 %v2484
        %2618 = vmatpush1.bf16.msra.mxu0 %v2483
        %2619 = vmatprep.subr.bf16.mxu0 %v2482
        %2620 = vmatpush1.bf16.msra.mxu0 %v2481
        %2621 = vmatprep.subr.bf16.mxu0 %v2480
        %2622 = vmatpush1.bf16.msra.mxu0 %v2479
        %2623 = vmatprep.subr.bf16.mxu0 %v2510
        %2624 = vmatpush2.bf16.msra.mxu0 %v2509
        %2625 = vmatprep.subr.bf16.mxu0 %v2508
        %2626 = vmatpush2.bf16.msra.mxu0 %v2507
        %2627 = vmatprep.subr.bf16.mxu0 %v2506
        %2628 = vmatpush2.bf16.msra.mxu0 %v2505
        %2629 = vmatprep.subr.bf16.mxu0 %v2504
        %2630 = vmatpush2.bf16.msra.mxu0 %v2503
        %2631 = vmatprep.subr.bf16.mxu0 %v2502
        %2632 = vmatpush2.bf16.msra.mxu0 %v2501
        %2633 = vmatprep.subr.bf16.mxu0 %v2500
        %2634 = vmatpush2.bf16.msra.mxu0 %v2499
        %2635 = vmatprep.subr.bf16.mxu0 %v2498
        %2636 = vmatpush2.bf16.msra.mxu0 %v2497
        %2637 = vmatprep.subr.bf16.mxu0 %v2496
        %2638 = vmatpush2.bf16.msra.mxu0 %v2495
        %2639 = vmatprep.mubr.bf16.mxu0 %v2220
        %2640 = vmatmul.mubr.bf16.gmra.mxu0 %v2219
        %v2641 = vpop.f32.mrf.mxu0
        %v2642 = vadd.f32 0.0, %v2641
        %v2643 = vpop.f32.mrf.mxu0
        %v2644 = vadd.f32 0.0, %v2643
        %v2645 = vpop.f32.mrf.mxu0
        %v2646 = vpop.f32.mrf.mxu0
        %2647 = vdwg.mxu0
        %2648 = vmatprep.subr.bf16.mxu0 %v2526
        %2649 = vmatpush1.bf16.msra.mxu0 %v2525
        %2650 = vmatprep.subr.bf16.mxu0 %v2524
        %2651 = vmatpush1.bf16.msra.mxu0 %v2523
        %2652 = vmatprep.subr.bf16.mxu0 %v2522
        %2653 = vmatpush1.bf16.msra.mxu0 %v2521
        %2654 = vmatprep.subr.bf16.mxu0 %v2520
        %2655 = vmatpush1.bf16.msra.mxu0 %v2519
        %2656 = vmatprep.subr.bf16.mxu0 %v2518
        %2657 = vmatpush1.bf16.msra.mxu0 %v2517
        %2658 = vmatprep.subr.bf16.mxu0 %v2516
        %2659 = vmatpush1.bf16.msra.mxu0 %v2515
        %2660 = vmatprep.subr.bf16.mxu0 %v2514
        %2661 = vmatpush1.bf16.msra.mxu0 %v2513
        %2662 = vmatprep.subr.bf16.mxu0 %v2512
        %2663 = vmatpush1.bf16.msra.mxu0 %v2511
        %2664 = vmatprep.subr.bf16.mxu0 %v2542
        %2665 = vmatpush2.bf16.msra.mxu0 %v2541
        %2666 = vmatprep.subr.bf16.mxu0 %v2540
        %2667 = vmatpush2.bf16.msra.mxu0 %v2539
        %2668 = vmatprep.subr.bf16.mxu0 %v2538
        %2669 = vmatpush2.bf16.msra.mxu0 %v2537
        %2670 = vmatprep.subr.bf16.mxu0 %v2536
        %2671 = vmatpush2.bf16.msra.mxu0 %v2535
        %2672 = vmatprep.subr.bf16.mxu0 %v2534
        %2673 = vmatpush2.bf16.msra.mxu0 %v2533
        %2674 = vmatprep.subr.bf16.mxu0 %v2532
        %2675 = vmatpush2.bf16.msra.mxu0 %v2531
        %2676 = vmatprep.subr.bf16.mxu0 %v2530
        %2677 = vmatpush2.bf16.msra.mxu0 %v2529
        %2678 = vmatprep.subr.bf16.mxu0 %v2528
        %2679 = vmatpush2.bf16.msra.mxu0 %v2527
        %2680 = vmatprep.mubr.bf16.mxu0 %v2222
        %2681 = vmatmul.mubr.bf16.gmra.mxu0 %v2221
        %v2682 = vpop.f32.mrf.mxu0
        %v2683 = vadd.f32 %v2642, %v2682
        %v2684 = vpop.f32.mrf.mxu0
        %v2685 = vadd.f32 %v2644, %v2684
        %v2686 = vpop.f32.mrf.mxu0
        %v2687 = vpop.f32.mrf.mxu0
        %2688 = vdwg.mxu0
        %2689 = vst [vmem:[%s296] sm:$0xff] %v2683
        %2690 = vst [vmem:[%s296 + $0x8] sm:$0xff] %v2685
        %p2691 = scmp.lt.s32.totalorder %s21, 1
        %s2692 = scalar_select %p2691, %s21, 1
        %s2693 = smul.addr %s2692, 2
        %s2694 = smul.addr %s2693, 8
        %s2695 = scalar_lea.vmem %s4, %s2694
        // Predicated region
        $region49: #{policy_forward.4} parent=35 // pred_check
          %p2696 = pneg %p138
        $region50: #{policy_forward.4} parent=35 // pred_check_branch
          %2698 = sbr.rel (%p2696) target = $region52
        $region51: #{policy_forward.4} parent=35 // pred_region
          _
        $region52: #{policy_forward.4} parent=35 // pred_fallthru
          _
      $region36: #{policy_forward.4} parent=5 // pred_fallthru
        _
      %p2699 = scmp.le.s32.totalorder 2, %s16
      // Predicated region
      $region53: #{policy_forward.4} parent=5 // pred_check
        %p2700 = pneg %p2699
      $region54: #{policy_forward.4} parent=5 // pred_check_branch
        %2702 = sbr.rel (%p2700) target = $region56
      $region55: #{policy_forward.4} parent=5 // pred_region
        %s2703 = ssub.s32 %s16, 2
        // Predicated region
        $region57: #{policy_forward.4} parent=55 // pred_check
          %p2704 = pneg %p144
        $region58: #{policy_forward.4} parent=55 // pred_check_branch
          %2706 = sbr.rel (%p2704) target = $region60
        $region59: #{policy_forward.4} parent=55 // pred_region
          %p2707 = scmp.lt.s32.totalorder %s22, 1
          %s2708 = scalar_select %p2707, %s22, 1
          %s2709 = smul.addr %s2708, 2
          %s2710 = smul.addr %s2709, 8
          %s2711 = scalar_lea.vmem %s4, %s2710
        $region60: #{policy_forward.4} parent=55 // pred_fallthru
          _
      $region56: #{policy_forward.4} parent=5 // pred_fallthru
        _
    $region6: #{policy_forward.4} parent=1 // loop_footer
      %s20 = sadd.s32 1, %s16
    $region7: #{policy_forward.4} parent=1 // loop_footer_branch
      %15 = sbr.rel target = $region3
    $region8: #{policy_forward.4} parent=1 // loop_exit
      _
    %2712 = vsyncpa [#allocation3], 1
    %s2713 = scalar_lea.sflag [#allocation3], 1
    %2714 = vsyncpa %s2713, 1
    %2715 = vsyncpa [#allocation5], 1
    %s2716 = scalar_lea.sflag [#allocation5], 1
    %2717 = vsyncpa %s2716, 1

</llo_original>
